<compile_context>
chip_gen: v7x
topology: tpu7x:2x2x1
jax: 0.10.0
libtpu: 0.0.40
codegen_flags: <defaults>
</compile_context>

<pallas_src>
import math

import jax
import jax.numpy as jnp
from jax.experimental import pallas as pl

# ---- small, module-consistent sizes -----------------------------------------
EMBED = 32           # embed_dim
HEADS = 4            # num_heads
HEAD_DIM = EMBED // HEADS
FFN = 4 * EMBED      # Linear(embed, 4*embed) -> 128
SEQ = 8
BATCH = 2
ROWS = SEQ * BATCH   # flattened token rows, seq-major: row = s*BATCH + b
EPS = 1e-5           # nn.LayerNorm default
NEG_BIG = -1e30      # additive mask value for cross-batch attention pairs

assert EMBED % HEADS == 0, "head split requires EMBED % HEADS == 0"


def transformer_kernel(x_ref, mask_ref, wqkv_ref, bqkv_ref, wo_ref, bo_ref,
                       g1_ref, beta1_ref, w1_ref, b1_ref, w2_ref, b2_ref,
                       g2_ref, beta2_ref, o_ref):
    """Single invocation over the whole seq-major (SEQ*BATCH, EMBED) slab."""
    x = x_ref[...]                                           # (R, E) = (16, 32)

    # ---------------- fused QKV projection (q columns pre-scaled) -------------
    # Weight columns are interleaved per head at prep time: (h, {q,k,v}, d).
    qkv = jnp.dot(x, wqkv_ref[...],
                  preferred_element_type=jnp.float32) + bqkv_ref[...]       # (R, H*3*D)

    # ---------------- split into (H, R, D) per-head operands ------------------
    qkv_h = jnp.stack(
        [qkv[:, h * 3 * HEAD_DIM:(h + 1) * 3 * HEAD_DIM] for h in range(HEADS)],
        axis=0)                                              # (H, R, 3D)
    q = qkv_h[..., 0 * HEAD_DIM:1 * HEAD_DIM]                # (H, R, D), already scaled
    k = qkv_h[..., 1 * HEAD_DIM:2 * HEAD_DIM]
    v = qkv_h[..., 2 * HEAD_DIM:3 * HEAD_DIM]

    # ---------------- single batched attention over all heads -----------------
    # Heads ride the leading batch axis; cross-batch (token belongs to the other
    # sequence) score entries are killed with a precomputed additive mask.
    s = jnp.einsum('hqd,hkd->hqk', q, k,
                   preferred_element_type=jnp.float32)       # (H, R, R)
    s = s + mask_ref[...]                                    # broadcast (R, R)
    s = s - jnp.max(s, axis=-1, keepdims=True)
    p = jnp.exp(s)
    denom = jnp.sum(p, axis=-1, keepdims=True)               # (H, R, 1)
    ctx = jnp.einsum('hqk,hkd->hqd', p, v,
                     preferred_element_type=jnp.float32)     # (H, R, D)
    ctx = ctx * pl.reciprocal(denom, approx=True)            # softmax norm (EUP)

    # ---------------- single output-projection matmul (MXU) -------------------
    ctx2 = jnp.concatenate([ctx[h] for h in range(HEADS)], axis=-1)          # (R, E)
    attn = jnp.dot(ctx2, wo_ref[...],
                   preferred_element_type=jnp.float32) + bo_ref[...]         # (R, E)

    # ---------------- residual + LayerNorm 1 (dropout = identity) -------------
    x1 = x + attn
    mu = jnp.mean(x1, axis=-1, keepdims=True)
    var = jnp.mean((x1 - mu) ** 2, axis=-1, keepdims=True)
    x1 = (x1 - mu) * jax.lax.rsqrt(var + EPS) * g1_ref[...] + beta1_ref[...]

    # ---------------- feed-forward network -------------------------------------
    h1 = jnp.dot(x1, w1_ref[...], preferred_element_type=jnp.float32) + b1_ref[...]
    h1 = jnp.maximum(h1, 0.0)                                # ReLU
    ffn = jnp.dot(h1, w2_ref[...], preferred_element_type=jnp.float32) + b2_ref[...]

    # ---------------- residual + LayerNorm 2 -----------------------------------
    x2 = x1 + ffn                                            # dropout = identity
    mu2 = jnp.mean(x2, axis=-1, keepdims=True)
    var2 = jnp.mean((x2 - mu2) ** 2, axis=-1, keepdims=True)
    o_ref[...] = (x2 - mu2) * jax.lax.rsqrt(var2 + EPS) * g2_ref[...] + beta2_ref[...]


def make_params(key):
    """Deterministic synthetic parameters (shapes follow the PyTorch module)."""
    ks = jax.random.split(key, 8)
    s = 0.1
    # Weights are stored pre-transposed so the math is x @ W (+ b).
    wqkv = s * jax.random.normal(ks[0], (EMBED, 3 * EMBED), jnp.float32)   # in_proj_weight.T
    bqkv = s * jax.random.normal(ks[1], (1, 3 * EMBED), jnp.float32)       # in_proj_bias
    wo = s * jax.random.normal(ks[2], (EMBED, EMBED), jnp.float32)         # out_proj.weight.T
    bo = s * jax.random.normal(ks[3], (1, EMBED), jnp.float32)             # out_proj.bias
    g1 = jnp.ones((1, EMBED), jnp.float32)                                 # norm1.weight
    beta1 = jnp.zeros((1, EMBED), jnp.float32)                             # norm1.bias
    g2 = jnp.ones((1, EMBED), jnp.float32)                                 # norm2.weight
    beta2 = jnp.zeros((1, EMBED), jnp.float32)                             # norm2.bias
    w1 = s * jax.random.normal(ks[4], (EMBED, FFN), jnp.float32)           # ffn[0].weight.T
    b1 = s * jax.random.normal(ks[5], (1, FFN), jnp.float32)               # ffn[0].bias
    w2 = s * jax.random.normal(ks[6], (FFN, EMBED), jnp.float32)           # ffn[3].weight.T
    b2 = s * jax.random.normal(ks[7], (1, EMBED), jnp.float32)             # ffn[3].bias
    return (wqkv, bqkv, wo, bo, g1, beta1, g2, beta2, w1, b1, w2, b2)


def prepare_params(params):
    """One-time (hoisted out of the per-call path) parameter preparation:
      * fold 1/sqrt(HEAD_DIM) into the q projection weight and bias,
      * interleave QKV weight/bias columns per head -> (h, {q,k,v}, d),
      * build the seq-major cross-batch additive attention mask."""
    (wqkv, bqkv, wo, bo, g1, beta1, g2, beta2, w1, b1, w2, b2) = params
    scale = 1.0 / math.sqrt(HEAD_DIM)
    D = HEAD_DIM

    wcols, bcols = [], []
    for h in range(HEADS):
        wcols += [wqkv[:, h * D:(h + 1) * D] * scale,
                  wqkv[:, EMBED + h * D:EMBED + (h + 1) * D],
                  wqkv[:, 2 * EMBED + h * D:2 * EMBED + (h + 1) * D]]
        bcols += [bqkv[:, h * D:(h + 1) * D] * scale,
                  bqkv[:, EMBED + h * D:EMBED + (h + 1) * D],
                  bqkv[:, 2 * EMBED + h * D:2 * EMBED + (h + 1) * D]]
    wqkv_p = jnp.concatenate(wcols, axis=1)                  # (E, H*3*D)
    bqkv_p = jnp.concatenate(bcols, axis=1)                  # (1, H*3*D)

    # Seq-major rows: row = s*BATCH + b  ->  same sequence iff row indices agree mod BATCH.
    r = jnp.arange(ROWS)
    same_batch = (r[:, None] % BATCH) == (r[None, :] % BATCH)
    mask = jnp.where(same_batch, 0.0, NEG_BIG).astype(jnp.float32)          # (R, R)

    return (mask, wqkv_p, bqkv_p, wo, bo, g1, beta1, w1, b1, w2, b2, g2, beta2)


@jax.jit
def cross_modal_transformer(x_sbe, prepped):
    """x_sbe: (seq, batch, embed) -- PyTorch MultiheadAttention convention.
    `prepped` is the output of prepare_params (computed once, outside this path)."""
    x = x_sbe.reshape(ROWS, EMBED)           # pure reshape (seq-major rows), no transpose
    out = pl.pallas_call(
        transformer_kernel,
        out_shape=jax.ShapeDtypeStruct((ROWS, EMBED), jnp.float32),
    )(x, *prepped)
    return out.reshape(SEQ, BATCH, EMBED)    # pure reshape back, no transpose


def reference_forward(x_sbe, params):
    """Pure-JAX reference with identical math (eval-mode dropout, exact softmax)."""
    (wqkv, bqkv, wo, bo, g1, beta1, g2, beta2, w1, b1, w2, b2) = params
    x = jnp.transpose(x_sbe, (1, 0, 2))                                    # (B, S, E)

    def ln(v, g, beta):
        mu = jnp.mean(v, axis=-1, keepdims=True)
        var = jnp.mean((v - mu) ** 2, axis=-1, keepdims=True)
        return (v - mu) * jax.lax.rsqrt(var + EPS) * g + beta

    qkv = x @ wqkv + bqkv
    q, k, v = jnp.split(qkv, 3, axis=-1)
    B = x.shape[0]
    qh = q.reshape(B, SEQ, HEADS, HEAD_DIM).transpose(0, 2, 1, 3)
    kh = k.reshape(B, SEQ, HEADS, HEAD_DIM).transpose(0, 2, 1, 3)
    vh = v.reshape(B, SEQ, HEADS, HEAD_DIM).transpose(0, 2, 1, 3)
    scores = jnp.einsum("bhqd,bhkd->bhqk", qh, kh) / math.sqrt(HEAD_DIM)
    p = jax.nn.softmax(scores, axis=-1)
    attn = jnp.einsum("bhqk,bhkd->bhqd", p, vh).transpose(0, 2, 1, 3).reshape(B, SEQ, EMBED)
    attn = attn @ wo + bo

    x1 = ln(x + attn, g1, beta1)
    ffn = jnp.maximum(x1 @ w1 + b1, 0.0) @ w2 + b2
    x2 = ln(x1 + ffn, g2, beta2)
    return jnp.transpose(x2, (1, 0, 2))


if __name__ == "__main__":
    key = jax.random.PRNGKey(0)
    k_x, k_p = jax.random.split(key)
    # x: (seq, batch, embed) per PyTorch nn.MultiheadAttention default layout
    x = jax.random.normal(k_x, (SEQ, BATCH, EMBED), jnp.float32)
    params = make_params(k_p)

    # One-time parameter packing, hoisted out of the per-call path.
    prepped = prepare_params(params)

    out = cross_modal_transformer(x, prepped)
    out = jax.block_until_ready(out)

    ref = reference_forward(x, params)
    assert out.shape == (SEQ, BATCH, EMBED)
    # Tolerance accommodates the approximate (EUP) softmax reciprocal in the kernel.
    assert jnp.allclose(out, ref, rtol=2e-3, atol=2e-3), "mismatch vs JAX reference"

    print("KERNEL_OK")
</pallas_src>

<mosaic_0001>
module attributes {stable_mosaic.version = 11 : i64} {
  func.func @transformer_kernel(%arg0: memref<16x32xf32, #tpu.memory_space<vmem>>, %arg1: memref<16x16xf32, #tpu.memory_space<vmem>>, %arg2: memref<32x96xf32, #tpu.memory_space<vmem>>, %arg3: memref<1x96xf32, #tpu.memory_space<vmem>>, %arg4: memref<32x32xf32, #tpu.memory_space<vmem>>, %arg5: memref<1x32xf32, #tpu.memory_space<vmem>>, %arg6: memref<1x32xf32, #tpu.memory_space<vmem>>, %arg7: memref<1x32xf32, #tpu.memory_space<vmem>>, %arg8: memref<32x128xf32, #tpu.memory_space<vmem>>, %arg9: memref<1x128xf32, #tpu.memory_space<vmem>>, %arg10: memref<128x32xf32, #tpu.memory_space<vmem>>, %arg11: memref<1x32xf32, #tpu.memory_space<vmem>>, %arg12: memref<1x32xf32, #tpu.memory_space<vmem>>, %arg13: memref<1x32xf32, #tpu.memory_space<vmem>>, %arg14: memref<16x32xf32, #tpu.memory_space<vmem>>) attributes {dimension_semantics = [], scalar_prefetch = 0 : i64, scratch_operands = 0 : i64, tpu.core_type = #tpu.core_type<tc>} {
    %c0 = arith.constant 0 : index
    %c0_0 = arith.constant 0 : index
    %0 = vector.load %arg0[%c0, %c0_0] : memref<16x32xf32, #tpu.memory_space<vmem>>, vector<16x32xf32>
    %c0_1 = arith.constant 0 : index
    %c0_2 = arith.constant 0 : index
    %1 = vector.load %arg2[%c0_1, %c0_2] : memref<32x96xf32, #tpu.memory_space<vmem>>, vector<32x96xf32>
    %cst = arith.constant dense<0.000000e+00> : vector<16x96xf32>
    %2 = tpu.matmul %0, %1, %cst {dimension_numbers = #tpu.dot_dimension_numbers<[1], [0], [0], [1], [0, 0, 1, 1], [], []>} : vector<16x32xf32>, vector<32x96xf32>, vector<16x96xf32> -> vector<16x96xf32>
    %c0_3 = arith.constant 0 : index
    %c0_4 = arith.constant 0 : index
    %3 = vector.load %arg3[%c0_3, %c0_4] : memref<1x96xf32, #tpu.memory_space<vmem>>, vector<1x96xf32>
    %4 = vector.broadcast %3 : vector<1x96xf32> to vector<16x96xf32>
    %5 = arith.addf %2, %4 : vector<16x96xf32>
    %6 = vector.extract_strided_slice %5 {offsets = [0, 0], sizes = [16, 24], strides = [1, 1]} : vector<16x96xf32> to vector<16x24xf32>
    %7 = vector.extract_strided_slice %5 {offsets = [0, 24], sizes = [16, 24], strides = [1, 1]} : vector<16x96xf32> to vector<16x24xf32>
    %8 = vector.extract_strided_slice %5 {offsets = [0, 48], sizes = [16, 24], strides = [1, 1]} : vector<16x96xf32> to vector<16x24xf32>
    %9 = vector.extract_strided_slice %5 {offsets = [0, 72], sizes = [16, 24], strides = [1, 1]} : vector<16x96xf32> to vector<16x24xf32>
    %10 = vector.shape_cast %6 : vector<16x24xf32> to vector<1x16x24xf32>
    %11 = vector.shape_cast %7 : vector<16x24xf32> to vector<1x16x24xf32>
    %12 = vector.shape_cast %8 : vector<16x24xf32> to vector<1x16x24xf32>
    %13 = vector.shape_cast %9 : vector<16x24xf32> to vector<1x16x24xf32>
    %14 = tpu.concatenate %10, %11, %12, %13 in 0 : vector<1x16x24xf32>, vector<1x16x24xf32>, vector<1x16x24xf32>, vector<1x16x24xf32> -> vector<4x16x24xf32>
    %15 = vector.extract_strided_slice %14 {offsets = [0, 0, 0], sizes = [4, 16, 8], strides = [1, 1, 1]} : vector<4x16x24xf32> to vector<4x16x8xf32>
    %16 = vector.extract_strided_slice %14 {offsets = [0, 0, 8], sizes = [4, 16, 8], strides = [1, 1, 1]} : vector<4x16x24xf32> to vector<4x16x8xf32>
    %17 = vector.extract_strided_slice %14 {offsets = [0, 0, 16], sizes = [4, 16, 8], strides = [1, 1, 1]} : vector<4x16x24xf32> to vector<4x16x8xf32>
    "tpu.trace_start"() <{level = 10 : i32, message = "hqd,hkd->hqk"}> : () -> ()
    %cst_5 = arith.constant dense<0.000000e+00> : vector<4x16x16xf32>
    %18 = tpu.matmul %15, %16, %cst_5 {dimension_numbers = #tpu.dot_dimension_numbers<[2], [2], [1], [1], [0, 0, 0, 1, 1, 1], [0], [0]>} : vector<4x16x8xf32>, vector<4x16x8xf32>, vector<4x16x16xf32> -> vector<4x16x16xf32>
    "tpu.trace_stop"() : () -> ()
    %c0_6 = arith.constant 0 : index
    %c0_7 = arith.constant 0 : index
    %19 = vector.load %arg1[%c0_6, %c0_7] : memref<16x16xf32, #tpu.memory_space<vmem>>, vector<16x16xf32>
    %20 = vector.shape_cast %19 : vector<16x16xf32> to vector<1x16x16xf32>
    %21 = vector.broadcast %20 : vector<1x16x16xf32> to vector<4x16x16xf32>
    %22 = arith.addf %18, %21 : vector<4x16x16xf32>
    %cst_8 = arith.constant dense<0xFF800000> : vector<4x16xf32>
    %23 = vector.multi_reduction <maximumf>, %22, %cst_8 [2] : vector<4x16x16xf32> to vector<4x16xf32>
    %24 = vector.shape_cast %23 : vector<4x16xf32> to vector<4x16x1xf32>
    %25 = vector.broadcast %24 : vector<4x16x1xf32> to vector<4x16x16xf32>
    %26 = arith.subf %22, %25 : vector<4x16x16xf32>
    %27 = math.exp %26 : vector<4x16x16xf32>
    %cst_9 = arith.constant dense<0.000000e+00> : vector<4x16xf32>
    %28 = vector.multi_reduction <add>, %27, %cst_9 [2] : vector<4x16x16xf32> to vector<4x16xf32>
    %29 = vector.shape_cast %28 : vector<4x16xf32> to vector<4x16x1xf32>
    "tpu.trace_start"() <{level = 10 : i32, message = "hqk,hkd->hqd"}> : () -> ()
    %cst_10 = arith.constant dense<0.000000e+00> : vector<4x16x8xf32>
    %30 = tpu.matmul %27, %17, %cst_10 {dimension_numbers = #tpu.dot_dimension_numbers<[2], [1], [1], [2], [0, 0, 0, 1, 1, 2], [0], [0]>} : vector<4x16x16xf32>, vector<4x16x8xf32>, vector<4x16x8xf32> -> vector<4x16x8xf32>
    "tpu.trace_stop"() : () -> ()
    %31 = tpu.reciprocal %29 {approx = true} : vector<4x16x1xf32> -> vector<4x16x1xf32>
    %32 = vector.broadcast %31 : vector<4x16x1xf32> to vector<4x16x8xf32>
    %33 = arith.mulf %30, %32 : vector<4x16x8xf32>
    %34 = vector.extract_strided_slice %33 {offsets = [0, 0, 0], sizes = [1, 16, 8], strides = [1, 1, 1]} : vector<4x16x8xf32> to vector<1x16x8xf32>
    %35 = vector.shape_cast %34 : vector<1x16x8xf32> to vector<16x8xf32>
    %36 = vector.extract_strided_slice %33 {offsets = [1, 0, 0], sizes = [1, 16, 8], strides = [1, 1, 1]} : vector<4x16x8xf32> to vector<1x16x8xf32>
    %37 = vector.shape_cast %36 : vector<1x16x8xf32> to vector<16x8xf32>
    %38 = vector.extract_strided_slice %33 {offsets = [2, 0, 0], sizes = [1, 16, 8], strides = [1, 1, 1]} : vector<4x16x8xf32> to vector<1x16x8xf32>
    %39 = vector.shape_cast %38 : vector<1x16x8xf32> to vector<16x8xf32>
    %40 = vector.extract_strided_slice %33 {offsets = [3, 0, 0], sizes = [1, 16, 8], strides = [1, 1, 1]} : vector<4x16x8xf32> to vector<1x16x8xf32>
    %41 = vector.shape_cast %40 : vector<1x16x8xf32> to vector<16x8xf32>
    %42 = tpu.concatenate %35, %37, %39, %41 in 1 : vector<16x8xf32>, vector<16x8xf32>, vector<16x8xf32>, vector<16x8xf32> -> vector<16x32xf32>
    %c0_11 = arith.constant 0 : index
    %c0_12 = arith.constant 0 : index
    %43 = vector.load %arg4[%c0_11, %c0_12] : memref<32x32xf32, #tpu.memory_space<vmem>>, vector<32x32xf32>
    %cst_13 = arith.constant dense<0.000000e+00> : vector<16x32xf32>
    %44 = tpu.matmul %42, %43, %cst_13 {dimension_numbers = #tpu.dot_dimension_numbers<[1], [0], [0], [1], [0, 0, 1, 1], [], []>} : vector<16x32xf32>, vector<32x32xf32>, vector<16x32xf32> -> vector<16x32xf32>
    %c0_14 = arith.constant 0 : index
    %c0_15 = arith.constant 0 : index
    %45 = vector.load %arg5[%c0_14, %c0_15] : memref<1x32xf32, #tpu.memory_space<vmem>>, vector<1x32xf32>
    %46 = vector.broadcast %45 : vector<1x32xf32> to vector<16x32xf32>
    %47 = arith.addf %44, %46 : vector<16x32xf32>
    %48 = arith.addf %0, %47 : vector<16x32xf32>
    %cst_16 = arith.constant dense<0.000000e+00> : vector<16xf32>
    %49 = vector.multi_reduction <add>, %48, %cst_16 [1] : vector<16x32xf32> to vector<16xf32>
    %50 = vector.shape_cast %49 : vector<16xf32> to vector<16x1xf32>
    %cst_17 = arith.constant 3.200000e+01 : f32
    %51 = vector.broadcast %cst_17 : f32 to vector<16x1xf32>
    %52 = arith.divf %50, %51 : vector<16x1xf32>
    %53 = vector.broadcast %52 : vector<16x1xf32> to vector<16x32xf32>
    %54 = arith.subf %48, %53 : vector<16x32xf32>
    %55 = arith.mulf %54, %54 : vector<16x32xf32>
    %cst_18 = arith.constant dense<0.000000e+00> : vector<16xf32>
    %56 = vector.multi_reduction <add>, %55, %cst_18 [1] : vector<16x32xf32> to vector<16xf32>
    %57 = vector.shape_cast %56 : vector<16xf32> to vector<16x1xf32>
    %cst_19 = arith.constant 3.200000e+01 : f32
    %58 = vector.broadcast %cst_19 : f32 to vector<16x1xf32>
    %59 = arith.divf %57, %58 : vector<16x1xf32>
    %60 = vector.broadcast %52 : vector<16x1xf32> to vector<16x32xf32>
    %61 = arith.subf %48, %60 : vector<16x32xf32>
    %cst_20 = arith.constant 9.99999974E-6 : f32
    %62 = vector.broadcast %cst_20 : f32 to vector<16x1xf32>
    %63 = arith.addf %59, %62 : vector<16x1xf32>
    %64 = math.rsqrt %63 : vector<16x1xf32>
    %65 = vector.broadcast %64 : vector<16x1xf32> to vector<16x32xf32>
    %66 = arith.mulf %61, %65 : vector<16x32xf32>
    %c0_21 = arith.constant 0 : index
    %c0_22 = arith.constant 0 : index
    %67 = vector.load %arg6[%c0_21, %c0_22] : memref<1x32xf32, #tpu.memory_space<vmem>>, vector<1x32xf32>
    %68 = vector.broadcast %67 : vector<1x32xf32> to vector<16x32xf32>
    %69 = arith.mulf %66, %68 : vector<16x32xf32>
    %c0_23 = arith.constant 0 : index
    %c0_24 = arith.constant 0 : index
    %70 = vector.load %arg7[%c0_23, %c0_24] : memref<1x32xf32, #tpu.memory_space<vmem>>, vector<1x32xf32>
    %71 = vector.broadcast %70 : vector<1x32xf32> to vector<16x32xf32>
    %72 = arith.addf %69, %71 : vector<16x32xf32>
    %c0_25 = arith.constant 0 : index
    %c0_26 = arith.constant 0 : index
    %73 = vector.load %arg8[%c0_25, %c0_26] : memref<32x128xf32, #tpu.memory_space<vmem>>, vector<32x128xf32>
    %cst_27 = arith.constant dense<0.000000e+00> : vector<16x128xf32>
    %74 = tpu.matmul %72, %73, %cst_27 {dimension_numbers = #tpu.dot_dimension_numbers<[1], [0], [0], [1], [0, 0, 1, 1], [], []>} : vector<16x32xf32>, vector<32x128xf32>, vector<16x128xf32> -> vector<16x128xf32>
    %c0_28 = arith.constant 0 : index
    %c0_29 = arith.constant 0 : index
    %75 = vector.load %arg9[%c0_28, %c0_29] : memref<1x128xf32, #tpu.memory_space<vmem>>, vector<1x128xf32>
    %76 = vector.broadcast %75 : vector<1x128xf32> to vector<16x128xf32>
    %77 = arith.addf %74, %76 : vector<16x128xf32>
    %cst_30 = arith.constant 0.000000e+00 : f32
    %78 = vector.broadcast %cst_30 : f32 to vector<16x128xf32>
    %79 = arith.maximumf %77, %78 : vector<16x128xf32>
    %c0_31 = arith.constant 0 : index
    %c0_32 = arith.constant 0 : index
    %80 = vector.load %arg10[%c0_31, %c0_32] : memref<128x32xf32, #tpu.memory_space<vmem>>, vector<128x32xf32>
    %cst_33 = arith.constant dense<0.000000e+00> : vector<16x32xf32>
    %81 = tpu.matmul %79, %80, %cst_33 {dimension_numbers = #tpu.dot_dimension_numbers<[1], [0], [0], [1], [0, 0, 1, 1], [], []>} : vector<16x128xf32>, vector<128x32xf32>, vector<16x32xf32> -> vector<16x32xf32>
    %c0_34 = arith.constant 0 : index
    %c0_35 = arith.constant 0 : index
    %82 = vector.load %arg11[%c0_34, %c0_35] : memref<1x32xf32, #tpu.memory_space<vmem>>, vector<1x32xf32>
    %83 = vector.broadcast %82 : vector<1x32xf32> to vector<16x32xf32>
    %84 = arith.addf %81, %83 : vector<16x32xf32>
    %85 = arith.addf %72, %84 : vector<16x32xf32>
    %cst_36 = arith.constant dense<0.000000e+00> : vector<16xf32>
    %86 = vector.multi_reduction <add>, %85, %cst_36 [1] : vector<16x32xf32> to vector<16xf32>
    %87 = vector.shape_cast %86 : vector<16xf32> to vector<16x1xf32>
    %cst_37 = arith.constant 3.200000e+01 : f32
    %88 = vector.broadcast %cst_37 : f32 to vector<16x1xf32>
    %89 = arith.divf %87, %88 : vector<16x1xf32>
    %90 = vector.broadcast %89 : vector<16x1xf32> to vector<16x32xf32>
    %91 = arith.subf %85, %90 : vector<16x32xf32>
    %92 = arith.mulf %91, %91 : vector<16x32xf32>
    %cst_38 = arith.constant dense<0.000000e+00> : vector<16xf32>
    %93 = vector.multi_reduction <add>, %92, %cst_38 [1] : vector<16x32xf32> to vector<16xf32>
    %94 = vector.shape_cast %93 : vector<16xf32> to vector<16x1xf32>
    %cst_39 = arith.constant 3.200000e+01 : f32
    %95 = vector.broadcast %cst_39 : f32 to vector<16x1xf32>
    %96 = arith.divf %94, %95 : vector<16x1xf32>
    %97 = vector.broadcast %89 : vector<16x1xf32> to vector<16x32xf32>
    %98 = arith.subf %85, %97 : vector<16x32xf32>
    %cst_40 = arith.constant 9.99999974E-6 : f32
    %99 = vector.broadcast %cst_40 : f32 to vector<16x1xf32>
    %100 = arith.addf %96, %99 : vector<16x1xf32>
    %101 = math.rsqrt %100 : vector<16x1xf32>
    %102 = vector.broadcast %101 : vector<16x1xf32> to vector<16x32xf32>
    %103 = arith.mulf %98, %102 : vector<16x32xf32>
    %c0_41 = arith.constant 0 : index
    %c0_42 = arith.constant 0 : index
    %104 = vector.load %arg12[%c0_41, %c0_42] : memref<1x32xf32, #tpu.memory_space<vmem>>, vector<1x32xf32>
    %105 = vector.broadcast %104 : vector<1x32xf32> to vector<16x32xf32>
    %106 = arith.mulf %103, %105 : vector<16x32xf32>
    %c0_43 = arith.constant 0 : index
    %c0_44 = arith.constant 0 : index
    %107 = vector.load %arg13[%c0_43, %c0_44] : memref<1x32xf32, #tpu.memory_space<vmem>>, vector<1x32xf32>
    %108 = vector.broadcast %107 : vector<1x32xf32> to vector<16x32xf32>
    %109 = arith.addf %106, %108 : vector<16x32xf32>
    %c0_45 = arith.constant 0 : index
    %c0_46 = arith.constant 0 : index
    %110 = vector.load %arg14[%c0_45, %c0_46] : memref<16x32xf32, #tpu.memory_space<vmem>>, vector<16x32xf32>
    tpu.vector_store %arg14[%c0_45, %c0_46], %109 {strides = array<i32>} : memref<16x32xf32, #tpu.memory_space<vmem>>, vector<16x32xf32>,
    return
  }
}

</mosaic_0001>

<llo_original>
// kernel: cross_modal_transformer.1
$region0: #{cross_modal_transformer.1}
  #allocation0 [shape = 'u32[]', space=smem, size = 0x4, offset = 0x4, fixed_abs, tag = 'smem constant byte address 0x4 - core index']
  #allocation1 [shape = 'u32[144,128]{1,0:T(1,128)}', space=vmem, size = 0x12000, scoped, tag = 'internal scratch']
  %s0 = inlined_call_operand.vmem [shape: f32[16,32], index: 0, kind: input, shape index: {}]
  %s1 = inlined_call_operand.vmem [shape: f32[16,16], index: 1, kind: input, shape index: {}]
  %s2 = inlined_call_operand.vmem [shape: f32[32,96], index: 2, kind: input, shape index: {}]
  %s3 = inlined_call_operand.vmem [shape: f32[1,96], index: 3, kind: input, shape index: {}]
  %s4 = inlined_call_operand.vmem [shape: f32[32,32], index: 4, kind: input, shape index: {}]
  %s5 = inlined_call_operand.vmem [shape: f32[1,32], index: 5, kind: input, shape index: {}]
  %s6 = inlined_call_operand.vmem [shape: f32[1,32], index: 6, kind: input, shape index: {}]
  %s7 = inlined_call_operand.vmem [shape: f32[1,32], index: 7, kind: input, shape index: {}]
  %s8 = inlined_call_operand.vmem [shape: f32[32,128], index: 8, kind: input, shape index: {}]
  %s9 = inlined_call_operand.vmem [shape: f32[1,128], index: 9, kind: input, shape index: {}]
  %s10 = inlined_call_operand.vmem [shape: f32[128,32], index: 10, kind: input, shape index: {}]
  %s11 = inlined_call_operand.vmem [shape: f32[1,32], index: 11, kind: input, shape index: {}]
  %s12 = inlined_call_operand.vmem [shape: f32[1,32], index: 12, kind: input, shape index: {}]
  %s13 = inlined_call_operand.vmem [shape: f32[1,32], index: 13, kind: input, shape index: {}]
  %s14 = inlined_call_operand.hbm [shape: f32[16,32], index: 14, kind: output, shape index: {}]
  %s15 = sld [smem:[#allocation0]]
  $region66: #{cross_modal_transformer.1} parent=0
    _
  %s17 = ssub.s32 1, %s15
  %s18 = scalar_select 0, %s17, %s15
  $region1: #{cross_modal_transformer.1} parent=0
    #allocation2 [shape = 'u8[8192]{0}', space=vmem, size = 0x2000, scoped, tag = 'output window, operand 0, single buffered']
    #allocation3 [shape = 's32[1]{0}', space=sflag, size = 0x4, scoped, tag = 'scoped memory for cross_modal_transformer.1']
    %19 = vsyncpa [#allocation3], 0
    // Predicated region
    $region2: #{cross_modal_transformer.1} parent=1 // pred_check
      _
    $region3: #{cross_modal_transformer.1} parent=1 // pred_check_branch
      %21 = sbr.rel (0) target = $region5
    $region4: #{cross_modal_transformer.1} parent=1 // pred_region
      _
    $region5: #{cross_modal_transformer.1} parent=1 // pred_fallthru
      _
    // Predicated region
    $region6: #{cross_modal_transformer.1} parent=1 // pred_check
      _
    $region7: #{cross_modal_transformer.1} parent=1 // pred_check_branch
      %23 = sbr.rel (0) target = $region9
    $region8: #{cross_modal_transformer.1} parent=1 // pred_region
      _
    $region9: #{cross_modal_transformer.1} parent=1 // pred_fallthru
      _
    // Predicated region
    $region10: #{cross_modal_transformer.1} parent=1 // pred_check
      _
    $region11: #{cross_modal_transformer.1} parent=1 // pred_check_branch
      %25 = sbr.rel (0) target = $region13
    $region12: #{cross_modal_transformer.1} parent=1 // pred_region
      _
    $region13: #{cross_modal_transformer.1} parent=1 // pred_fallthru
      _
    // Predicated region
    $region14: #{cross_modal_transformer.1} parent=1 // pred_check
      _
    $region15: #{cross_modal_transformer.1} parent=1 // pred_check_branch
      %27 = sbr.rel (0) target = $region17
    $region16: #{cross_modal_transformer.1} parent=1 // pred_region
      _
    $region17: #{cross_modal_transformer.1} parent=1 // pred_fallthru
      _
    // Predicated region
    $region18: #{cross_modal_transformer.1} parent=1 // pred_check
      _
    $region19: #{cross_modal_transformer.1} parent=1 // pred_check_branch
      %29 = sbr.rel (0) target = $region21
    $region20: #{cross_modal_transformer.1} parent=1 // pred_region
      _
    $region21: #{cross_modal_transformer.1} parent=1 // pred_fallthru
      _
    // Predicated region
    $region22: #{cross_modal_transformer.1} parent=1 // pred_check
      _
    $region23: #{cross_modal_transformer.1} parent=1 // pred_check_branch
      %31 = sbr.rel (0) target = $region25
    $region24: #{cross_modal_transformer.1} parent=1 // pred_region
      _
    $region25: #{cross_modal_transformer.1} parent=1 // pred_fallthru
      _
    // Predicated region
    $region26: #{cross_modal_transformer.1} parent=1 // pred_check
      _
    $region27: #{cross_modal_transformer.1} parent=1 // pred_check_branch
      %33 = sbr.rel (0) target = $region29
    $region28: #{cross_modal_transformer.1} parent=1 // pred_region
      _
    $region29: #{cross_modal_transformer.1} parent=1 // pred_fallthru
      _
    // Predicated region
    $region30: #{cross_modal_transformer.1} parent=1 // pred_check
      _
    $region31: #{cross_modal_transformer.1} parent=1 // pred_check_branch
      %35 = sbr.rel (0) target = $region33
    $region32: #{cross_modal_transformer.1} parent=1 // pred_region
      _
    $region33: #{cross_modal_transformer.1} parent=1 // pred_fallthru
      _
    // Predicated region
    $region34: #{cross_modal_transformer.1} parent=1 // pred_check
      _
    $region35: #{cross_modal_transformer.1} parent=1 // pred_check_branch
      %37 = sbr.rel (0) target = $region37
    $region36: #{cross_modal_transformer.1} parent=1 // pred_region
      _
    $region37: #{cross_modal_transformer.1} parent=1 // pred_fallthru
      _
    // Predicated region
    $region38: #{cross_modal_transformer.1} parent=1 // pred_check
      _
    $region39: #{cross_modal_transformer.1} parent=1 // pred_check_branch
      %39 = sbr.rel (0) target = $region41
    $region40: #{cross_modal_transformer.1} parent=1 // pred_region
      _
    $region41: #{cross_modal_transformer.1} parent=1 // pred_fallthru
      _
    // Predicated region
    $region42: #{cross_modal_transformer.1} parent=1 // pred_check
      _
    $region43: #{cross_modal_transformer.1} parent=1 // pred_check_branch
      %41 = sbr.rel (0) target = $region45
    $region44: #{cross_modal_transformer.1} parent=1 // pred_region
      _
    $region45: #{cross_modal_transformer.1} parent=1 // pred_fallthru
      _
    // Predicated region
    $region46: #{cross_modal_transformer.1} parent=1 // pred_check
      _
    $region47: #{cross_modal_transformer.1} parent=1 // pred_check_branch
      %43 = sbr.rel (0) target = $region49
    $region48: #{cross_modal_transformer.1} parent=1 // pred_region
      _
    $region49: #{cross_modal_transformer.1} parent=1 // pred_fallthru
      _
    // Predicated region
    $region50: #{cross_modal_transformer.1} parent=1 // pred_check
      _
    $region51: #{cross_modal_transformer.1} parent=1 // pred_check_branch
      %45 = sbr.rel (0) target = $region53
    $region52: #{cross_modal_transformer.1} parent=1 // pred_region
      _
    $region53: #{cross_modal_transformer.1} parent=1 // pred_fallthru
      _
    // Predicated region
    $region54: #{cross_modal_transformer.1} parent=1 // pred_check
      _
    $region55: #{cross_modal_transformer.1} parent=1 // pred_check_branch
      %47 = sbr.rel (0) target = $region57
    $region56: #{cross_modal_transformer.1} parent=1 // pred_region
      _
    $region57: #{cross_modal_transformer.1} parent=1 // pred_fallthru
      _
    %v48 = vld [vmem:[%s0] sm:$0xff]
    %v49 = vld [vmem:[%s0 + $0x8] sm:$0xff]
    %v50 = vld [vmem:[%s2] sm:$0xff]
    %v51 = vld [vmem:[%s2 + $0x8] sm:$0xff]
    %v52 = vld [vmem:[%s2 + $0x10] sm:$0xff]
    %v53 = vld [vmem:[%s2 + $0x18] sm:$0xff]
    %v54 = vld [vmem:[%s3] sm:$0x1]
    %v56 = vlaneseq
    %v57 = vshrl.u32 %v56, 7
    %v58 = vsub.s32 0, %v57
    %v59 = vrot.slane %v54, %v58
    %vm61 = vcmask 261120
    %v63 = vsel %vm61, %v48, 0
    %v66 = vsel %vm61, %v49, 0
    %68 = vmatprep.subr.mxu0 0.0
    %69 = vmatpush1.msra.mxu0 %v50
    %70 = vmatprep.subr.mxu0 0.0
    %71 = vmatpush1.msra.mxu0 %v51
    %72 = vmatprep.subr.mxu0 0.0
    %73 = vmatpush1.msra.mxu0 %v52
    %74 = vmatprep.subr.mxu0 0.0
    %75 = vmatpush1.msra.mxu0 %v53
    %76 = vmatprep.subr.mxu0 0.0
    %77 = vmatpush1.msra.mxu0 0.0
    %78 = vmatprep.subr.mxu0 0.0
    %79 = vmatpush1.msra.mxu0 0.0
    %80 = vmatprep.subr.mxu0 0.0
    %81 = vmatpush1.msra.mxu0 0.0
    %82 = vmatprep.subr.mxu0 0.0
    %83 = vmatpush1.msra.mxu0 0.0
    %84 = vmatprep.subr.mxu0 0.0
    %85 = vmatpush1.msra.mxu0 0.0
    %86 = vmatprep.subr.mxu0 0.0
    %87 = vmatpush1.msra.mxu0 0.0
    %88 = vmatprep.subr.mxu0 0.0
    %89 = vmatpush1.msra.mxu0 0.0
    %90 = vmatprep.subr.mxu0 0.0
    %91 = vmatpush1.msra.mxu0 0.0
    %92 = vmatprep.subr.mxu0 0.0
    %93 = vmatpush1.msra.mxu0 0.0
    %94 = vmatprep.subr.mxu0 0.0
    %95 = vmatpush1.msra.mxu0 0.0
    %96 = vmatprep.subr.mxu0 0.0
    %97 = vmatpush1.msra.mxu0 0.0
    %98 = vmatprep.subr.mxu0 0.0
    %99 = vmatpush1.msra.mxu0 0.0
    %100 = vmatprep.subr.mxu0 0.0
    %101 = vmatpush1.msra.mxu0 0.0
    %102 = vmatprep.subr.mxu0 0.0
    %103 = vmatpush1.msra.mxu0 0.0
    %104 = vmatprep.subr.mxu0 0.0
    %105 = vmatpush1.msra.mxu0 0.0
    %106 = vmatprep.subr.mxu0 0.0
    %107 = vmatpush1.msra.mxu0 0.0
    %108 = vmatprep.subr.mxu0 0.0
    %109 = vmatpush1.msra.mxu0 0.0
    %110 = vmatprep.subr.mxu0 0.0
    %111 = vmatpush1.msra.mxu0 0.0
    %112 = vmatprep.subr.mxu0 0.0
    %113 = vmatpush1.msra.mxu0 0.0
    %114 = vmatprep.subr.mxu0 0.0
    %115 = vmatpush1.msra.mxu0 0.0
    %116 = vmatprep.subr.mxu0 0.0
    %117 = vmatpush1.msra.mxu0 0.0
    %118 = vmatprep.subr.mxu0 0.0
    %119 = vmatpush1.msra.mxu0 0.0
    %120 = vmatprep.subr.mxu0 0.0
    %121 = vmatpush1.msra.mxu0 0.0
    %122 = vmatprep.subr.mxu0 0.0
    %123 = vmatpush1.msra.mxu0 0.0
    %124 = vmatprep.subr.mxu0 0.0
    %125 = vmatpush1.msra.mxu0 0.0
    %126 = vmatprep.subr.mxu0 0.0
    %127 = vmatpush1.msra.mxu0 0.0
    %128 = vmatprep.subr.mxu0 0.0
    %129 = vmatpush1.msra.mxu0 0.0
    %130 = vmatprep.subr.mxu0 0.0
    %131 = vmatpush1.msra.mxu0 0.0
    %132 = vmatprep.mubr.f32.mxu0 0.0
    %133 = vmatmul.mubr.f32.gmra.mrb[0].mxu0 %v63
    %v134 = vpop.f32.mrb[0].mxu0
    %v135 = vadd.f32 %v59, %v134
    %v136 = vpop.f32.mrb[0].mxu0
    %137 = vmatprep.mubr.f32.mxu0 0.0
    %138 = vmatmul.mubr.f32.gmra.mrb[0].mxu0 %v66
    %v139 = vpop.f32.mrb[0].mxu0
    %v140 = vadd.f32 %v59, %v139
    %v141 = vpop.f32.mrb[0].mxu0
    %142 = vdwg.mxu0
    %145 = vrot.lane.b32.xlu0 %v135, 104
    %v146 = vpop.permute.xlu0 %145
    %147 = vrot.lane.b32.xlu0 %v140, 104
    %v148 = vpop.permute.xlu0 %147
    %149 = vrot.lane.b32.xlu0 %v135, 80
    %v150 = vpop.permute.xlu0 %149
    %151 = vrot.lane.b32.xlu0 %v140, 80
    %v152 = vpop.permute.xlu0 %151
    %153 = vrot.lane.b32.xlu0 %v135, 56
    %v154 = vpop.permute.xlu0 %153
    %155 = vrot.lane.b32.xlu0 %v140, 56
    %v156 = vpop.permute.xlu0 %155
    %v157 = vld [vmem:[%s1] sm:$0xff]
    %v158 = vld [vmem:[%s1 + $0x8] sm:$0xff]
    %159 = vrot.lane.b32.xlu0 %v135, 120
    %v160 = vpop.permute.xlu0 %159
    %161 = vrot.lane.b32.xlu0 %v140, 120
    %v162 = vpop.permute.xlu0 %161
    %vm163 = vcmask 64512
    %v164 = vsel %vm163, %v135, 0
    %v166 = vsel %vm163, %v140, 0
    %v168 = vsel %vm163, %v160, 0
    %v170 = vsel %vm163, %v162, 0
    %172 = vmatprep.subr.mxu0 0.0
    %173 = vmatpush1.xpose.msra.mxu0 %v168
    %174 = vmatprep.subr.mxu0 0.0
    %175 = vmatpush1.xpose.msra.mxu0 %v170
    %176 = vmatprep.subr.mxu0 0.0
    %177 = vmatpush1.xpose.msra.mxu0 0.0
    %178 = vmatprep.subr.mxu0 0.0
    %179 = vmatpush1.xpose.msra.mxu0 0.0
    %180 = vmatprep.subr.mxu0 0.0
    %181 = vmatpush1.xpose.msra.mxu0 0.0
    %182 = vmatprep.subr.mxu0 0.0
    %183 = vmatpush1.xpose.msra.mxu0 0.0
    %184 = vmatprep.subr.mxu0 0.0
    %185 = vmatpush1.xpose.msra.mxu0 0.0
    %186 = vmatprep.subr.mxu0 0.0
    %187 = vmatpush1.xpose.msra.mxu0 0.0
    %188 = vmatprep.subr.mxu0 0.0
    %189 = vmatpush1.xpose.msra.mxu0 0.0
    %190 = vmatprep.subr.mxu0 0.0
    %191 = vmatpush1.xpose.msra.mxu0 0.0
    %192 = vmatprep.subr.mxu0 0.0
    %193 = vmatpush1.xpose.msra.mxu0 0.0
    %194 = vmatprep.subr.mxu0 0.0
    %195 = vmatpush1.xpose.msra.mxu0 0.0
    %196 = vmatprep.subr.mxu0 0.0
    %197 = vmatpush1.xpose.msra.mxu0 0.0
    %198 = vmatprep.subr.mxu0 0.0
    %199 = vmatpush1.xpose.msra.mxu0 0.0
    %200 = vmatprep.subr.mxu0 0.0
    %201 = vmatpush1.xpose.msra.mxu0 0.0
    %202 = vmatprep.subr.mxu0 0.0
    %203 = vmatpush1.xpose.msra.mxu0 0.0
    %204 = vmatprep.subr.mxu0 0.0
    %205 = vmatpush1.xpose.msra.mxu0 0.0
    %206 = vmatprep.subr.mxu0 0.0
    %207 = vmatpush1.xpose.msra.mxu0 0.0
    %208 = vmatprep.subr.mxu0 0.0
    %209 = vmatpush1.xpose.msra.mxu0 0.0
    %210 = vmatprep.subr.mxu0 0.0
    %211 = vmatpush1.xpose.msra.mxu0 0.0
    %212 = vmatprep.subr.mxu0 0.0
    %213 = vmatpush1.xpose.msra.mxu0 0.0
    %214 = vmatprep.subr.mxu0 0.0
    %215 = vmatpush1.xpose.msra.mxu0 0.0
    %216 = vmatprep.subr.mxu0 0.0
    %217 = vmatpush1.xpose.msra.mxu0 0.0
    %218 = vmatprep.subr.mxu0 0.0
    %219 = vmatpush1.xpose.msra.mxu0 0.0
    %220 = vmatprep.subr.mxu0 0.0
    %221 = vmatpush1.xpose.msra.mxu0 0.0
    %222 = vmatprep.subr.mxu0 0.0
    %223 = vmatpush1.xpose.msra.mxu0 0.0
    %224 = vmatprep.subr.mxu0 0.0
    %225 = vmatpush1.xpose.msra.mxu0 0.0
    %226 = vmatprep.subr.mxu0 0.0
    %227 = vmatpush1.xpose.msra.mxu0 0.0
    %228 = vmatprep.subr.mxu0 0.0
    %229 = vmatpush1.xpose.msra.mxu0 0.0
    %230 = vmatprep.subr.mxu0 0.0
    %231 = vmatpush1.xpose.msra.mxu0 0.0
    %232 = vmatprep.subr.mxu0 0.0
    %233 = vmatpush1.xpose.msra.mxu0 0.0
    %234 = vmatprep.subr.mxu0 0.0
    %235 = vmatpush1.xpose.msra.mxu0 0.0
    %236 = vmatprep.mubr.f32.mxu0 0.0
    %237 = vmatmul.mubr.f32.gmra.mrb[0].mxu0 %v164
    %v238 = vpop.f32.mrb[0].mxu0
    %v239 = vadd.f32 %v157, %v238
    %v240 = vpop.f32.mrb[0].mxu0
    %241 = vmatprep.mubr.f32.mxu0 0.0
    %242 = vmatmul.mubr.f32.gmra.mrb[0].mxu0 %v166
    %v243 = vpop.f32.mrb[0].mxu0
    %v244 = vadd.f32 %v158, %v243
    %v245 = vpop.f32.mrb[0].mxu0
    %246 = vdwg.mxu0
    %247 = vrot.lane.b32.xlu0 %v146, 120
    %v248 = vpop.permute.xlu0 %247
    %249 = vrot.lane.b32.xlu0 %v148, 120
    %v250 = vpop.permute.xlu0 %249
    %v251 = vsel %vm163, %v146, 0
    %v253 = vsel %vm163, %v148, 0
    %v255 = vsel %vm163, %v248, 0
    %v257 = vsel %vm163, %v250, 0
    %259 = vmatprep.subr.mxu0 0.0
    %260 = vmatpush1.xpose.msra.mxu0 %v255
    %261 = vmatprep.subr.mxu0 0.0
    %262 = vmatpush1.xpose.msra.mxu0 %v257
    %263 = vmatprep.subr.mxu0 0.0
    %264 = vmatpush1.xpose.msra.mxu0 0.0
    %265 = vmatprep.subr.mxu0 0.0
    %266 = vmatpush1.xpose.msra.mxu0 0.0
    %267 = vmatprep.subr.mxu0 0.0
    %268 = vmatpush1.xpose.msra.mxu0 0.0
    %269 = vmatprep.subr.mxu0 0.0
    %270 = vmatpush1.xpose.msra.mxu0 0.0
    %271 = vmatprep.subr.mxu0 0.0
    %272 = vmatpush1.xpose.msra.mxu0 0.0
    %273 = vmatprep.subr.mxu0 0.0
    %274 = vmatpush1.xpose.msra.mxu0 0.0
    %275 = vmatprep.subr.mxu0 0.0
    %276 = vmatpush1.xpose.msra.mxu0 0.0
    %277 = vmatprep.subr.mxu0 0.0
    %278 = vmatpush1.xpose.msra.mxu0 0.0
    %279 = vmatprep.subr.mxu0 0.0
    %280 = vmatpush1.xpose.msra.mxu0 0.0
    %281 = vmatprep.subr.mxu0 0.0
    %282 = vmatpush1.xpose.msra.mxu0 0.0
    %283 = vmatprep.subr.mxu0 0.0
    %284 = vmatpush1.xpose.msra.mxu0 0.0
    %285 = vmatprep.subr.mxu0 0.0
    %286 = vmatpush1.xpose.msra.mxu0 0.0
    %287 = vmatprep.subr.mxu0 0.0
    %288 = vmatpush1.xpose.msra.mxu0 0.0
    %289 = vmatprep.subr.mxu0 0.0
    %290 = vmatpush1.xpose.msra.mxu0 0.0
    %291 = vmatprep.subr.mxu0 0.0
    %292 = vmatpush1.xpose.msra.mxu0 0.0
    %293 = vmatprep.subr.mxu0 0.0
    %294 = vmatpush1.xpose.msra.mxu0 0.0
    %295 = vmatprep.subr.mxu0 0.0
    %296 = vmatpush1.xpose.msra.mxu0 0.0
    %297 = vmatprep.subr.mxu0 0.0
    %298 = vmatpush1.xpose.msra.mxu0 0.0
    %299 = vmatprep.subr.mxu0 0.0
    %300 = vmatpush1.xpose.msra.mxu0 0.0
    %301 = vmatprep.subr.mxu0 0.0
    %302 = vmatpush1.xpose.msra.mxu0 0.0
    %303 = vmatprep.subr.mxu0 0.0
    %304 = vmatpush1.xpose.msra.mxu0 0.0
    %305 = vmatprep.subr.mxu0 0.0
    %306 = vmatpush1.xpose.msra.mxu0 0.0
    %307 = vmatprep.subr.mxu0 0.0
    %308 = vmatpush1.xpose.msra.mxu0 0.0
    %309 = vmatprep.subr.mxu0 0.0
    %310 = vmatpush1.xpose.msra.mxu0 0.0
    %311 = vmatprep.subr.mxu0 0.0
    %312 = vmatpush1.xpose.msra.mxu0 0.0
    %313 = vmatprep.subr.mxu0 0.0
    %314 = vmatpush1.xpose.msra.mxu0 0.0
    %315 = vmatprep.subr.mxu0 0.0
    %316 = vmatpush1.xpose.msra.mxu0 0.0
    %317 = vmatprep.subr.mxu0 0.0
    %318 = vmatpush1.xpose.msra.mxu0 0.0
    %319 = vmatprep.subr.mxu0 0.0
    %320 = vmatpush1.xpose.msra.mxu0 0.0
    %321 = vmatprep.subr.mxu0 0.0
    %322 = vmatpush1.xpose.msra.mxu0 0.0
    %323 = vmatprep.mubr.f32.mxu0 0.0
    %324 = vmatmul.mubr.f32.gmra.mrb[0].mxu0 %v251
    %v325 = vpop.f32.mrb[0].mxu0
    %v326 = vadd.f32 %v157, %v325
    %v327 = vpop.f32.mrb[0].mxu0
    %328 = vmatprep.mubr.f32.mxu0 0.0
    %329 = vmatmul.mubr.f32.gmra.mrb[0].mxu0 %v253
    %v330 = vpop.f32.mrb[0].mxu0
    %v331 = vadd.f32 %v158, %v330
    %v332 = vpop.f32.mrb[0].mxu0
    %333 = vdwg.mxu0
    %334 = vrot.lane.b32.xlu0 %v150, 120
    %v335 = vpop.permute.xlu0 %334
    %336 = vrot.lane.b32.xlu0 %v152, 120
    %v337 = vpop.permute.xlu0 %336
    %v338 = vsel %vm163, %v150, 0
    %v340 = vsel %vm163, %v152, 0
    %v342 = vsel %vm163, %v335, 0
    %v344 = vsel %vm163, %v337, 0
    %346 = vmatprep.subr.mxu0 0.0
    %347 = vmatpush1.xpose.msra.mxu0 %v342
    %348 = vmatprep.subr.mxu0 0.0
    %349 = vmatpush1.xpose.msra.mxu0 %v344
    %350 = vmatprep.subr.mxu0 0.0
    %351 = vmatpush1.xpose.msra.mxu0 0.0
    %352 = vmatprep.subr.mxu0 0.0
    %353 = vmatpush1.xpose.msra.mxu0 0.0
    %354 = vmatprep.subr.mxu0 0.0
    %355 = vmatpush1.xpose.msra.mxu0 0.0
    %356 = vmatprep.subr.mxu0 0.0
    %357 = vmatpush1.xpose.msra.mxu0 0.0
    %358 = vmatprep.subr.mxu0 0.0
    %359 = vmatpush1.xpose.msra.mxu0 0.0
    %360 = vmatprep.subr.mxu0 0.0
    %361 = vmatpush1.xpose.msra.mxu0 0.0
    %362 = vmatprep.subr.mxu0 0.0
    %363 = vmatpush1.xpose.msra.mxu0 0.0
    %364 = vmatprep.subr.mxu0 0.0
    %365 = vmatpush1.xpose.msra.mxu0 0.0
    %366 = vmatprep.subr.mxu0 0.0
    %367 = vmatpush1.xpose.msra.mxu0 0.0
    %368 = vmatprep.subr.mxu0 0.0
    %369 = vmatpush1.xpose.msra.mxu0 0.0
    %370 = vmatprep.subr.mxu0 0.0
    %371 = vmatpush1.xpose.msra.mxu0 0.0
    %372 = vmatprep.subr.mxu0 0.0
    %373 = vmatpush1.xpose.msra.mxu0 0.0
    %374 = vmatprep.subr.mxu0 0.0
    %375 = vmatpush1.xpose.msra.mxu0 0.0
    %376 = vmatprep.subr.mxu0 0.0
    %377 = vmatpush1.xpose.msra.mxu0 0.0
    %378 = vmatprep.subr.mxu0 0.0
    %379 = vmatpush1.xpose.msra.mxu0 0.0
    %380 = vmatprep.subr.mxu0 0.0
    %381 = vmatpush1.xpose.msra.mxu0 0.0
    %382 = vmatprep.subr.mxu0 0.0
    %383 = vmatpush1.xpose.msra.mxu0 0.0
    %384 = vmatprep.subr.mxu0 0.0
    %385 = vmatpush1.xpose.msra.mxu0 0.0
    %386 = vmatprep.subr.mxu0 0.0
    %387 = vmatpush1.xpose.msra.mxu0 0.0
    %388 = vmatprep.subr.mxu0 0.0
    %389 = vmatpush1.xpose.msra.mxu0 0.0
    %390 = vmatprep.subr.mxu0 0.0
    %391 = vmatpush1.xpose.msra.mxu0 0.0
    %392 = vmatprep.subr.mxu0 0.0
    %393 = vmatpush1.xpose.msra.mxu0 0.0
    %394 = vmatprep.subr.mxu0 0.0
    %395 = vmatpush1.xpose.msra.mxu0 0.0
    %396 = vmatprep.subr.mxu0 0.0
    %397 = vmatpush1.xpose.msra.mxu0 0.0
    %398 = vmatprep.subr.mxu0 0.0
    %399 = vmatpush1.xpose.msra.mxu0 0.0
    %400 = vmatprep.subr.mxu0 0.0
    %401 = vmatpush1.xpose.msra.mxu0 0.0
    %402 = vmatprep.subr.mxu0 0.0
    %403 = vmatpush1.xpose.msra.mxu0 0.0
    %404 = vmatprep.subr.mxu0 0.0
    %405 = vmatpush1.xpose.msra.mxu0 0.0
    %406 = vmatprep.subr.mxu0 0.0
    %407 = vmatpush1.xpose.msra.mxu0 0.0
    %408 = vmatprep.subr.mxu0 0.0
    %409 = vmatpush1.xpose.msra.mxu0 0.0
    %410 = vmatprep.mubr.f32.mxu0 0.0
    %411 = vmatmul.mubr.f32.gmra.mrb[0].mxu0 %v338
    %v412 = vpop.f32.mrb[0].mxu0
    %v413 = vadd.f32 %v157, %v412
    %v414 = vpop.f32.mrb[0].mxu0
    %415 = vmatprep.mubr.f32.mxu0 0.0
    %416 = vmatmul.mubr.f32.gmra.mrb[0].mxu0 %v340
    %v417 = vpop.f32.mrb[0].mxu0
    %v418 = vadd.f32 %v158, %v417
    %v419 = vpop.f32.mrb[0].mxu0
    %420 = vdwg.mxu0
    %421 = vrot.lane.b32.xlu0 %v154, 120
    %v422 = vpop.permute.xlu0 %421
    %423 = vrot.lane.b32.xlu0 %v156, 120
    %v424 = vpop.permute.xlu0 %423
    %v425 = vsel %vm163, %v154, 0
    %v427 = vsel %vm163, %v156, 0
    %v429 = vsel %vm163, %v422, 0
    %v431 = vsel %vm163, %v424, 0
    %433 = vmatprep.subr.mxu0 0.0
    %434 = vmatpush1.xpose.msra.mxu0 %v429
    %435 = vmatprep.subr.mxu0 0.0
    %436 = vmatpush1.xpose.msra.mxu0 %v431
    %437 = vmatprep.subr.mxu0 0.0
    %438 = vmatpush1.xpose.msra.mxu0 0.0
    %439 = vmatprep.subr.mxu0 0.0
    %440 = vmatpush1.xpose.msra.mxu0 0.0
    %441 = vmatprep.subr.mxu0 0.0
    %442 = vmatpush1.xpose.msra.mxu0 0.0
    %443 = vmatprep.subr.mxu0 0.0
    %444 = vmatpush1.xpose.msra.mxu0 0.0
    %445 = vmatprep.subr.mxu0 0.0
    %446 = vmatpush1.xpose.msra.mxu0 0.0
    %447 = vmatprep.subr.mxu0 0.0
    %448 = vmatpush1.xpose.msra.mxu0 0.0
    %449 = vmatprep.subr.mxu0 0.0
    %450 = vmatpush1.xpose.msra.mxu0 0.0
    %451 = vmatprep.subr.mxu0 0.0
    %452 = vmatpush1.xpose.msra.mxu0 0.0
    %453 = vmatprep.subr.mxu0 0.0
    %454 = vmatpush1.xpose.msra.mxu0 0.0
    %455 = vmatprep.subr.mxu0 0.0
    %456 = vmatpush1.xpose.msra.mxu0 0.0
    %457 = vmatprep.subr.mxu0 0.0
    %458 = vmatpush1.xpose.msra.mxu0 0.0
    %459 = vmatprep.subr.mxu0 0.0
    %460 = vmatpush1.xpose.msra.mxu0 0.0
    %461 = vmatprep.subr.mxu0 0.0
    %462 = vmatpush1.xpose.msra.mxu0 0.0
    %463 = vmatprep.subr.mxu0 0.0
    %464 = vmatpush1.xpose.msra.mxu0 0.0
    %465 = vmatprep.subr.mxu0 0.0
    %466 = vmatpush1.xpose.msra.mxu0 0.0
    %467 = vmatprep.subr.mxu0 0.0
    %468 = vmatpush1.xpose.msra.mxu0 0.0
    %469 = vmatprep.subr.mxu0 0.0
    %470 = vmatpush1.xpose.msra.mxu0 0.0
    %471 = vmatprep.subr.mxu0 0.0
    %472 = vmatpush1.xpose.msra.mxu0 0.0
    %473 = vmatprep.subr.mxu0 0.0
    %474 = vmatpush1.xpose.msra.mxu0 0.0
    %475 = vmatprep.subr.mxu0 0.0
    %476 = vmatpush1.xpose.msra.mxu0 0.0
    %477 = vmatprep.subr.mxu0 0.0
    %478 = vmatpush1.xpose.msra.mxu0 0.0
    %479 = vmatprep.subr.mxu0 0.0
    %480 = vmatpush1.xpose.msra.mxu0 0.0
    %481 = vmatprep.subr.mxu0 0.0
    %482 = vmatpush1.xpose.msra.mxu0 0.0
    %483 = vmatprep.subr.mxu0 0.0
    %484 = vmatpush1.xpose.msra.mxu0 0.0
    %485 = vmatprep.subr.mxu0 0.0
    %486 = vmatpush1.xpose.msra.mxu0 0.0
    %487 = vmatprep.subr.mxu0 0.0
    %488 = vmatpush1.xpose.msra.mxu0 0.0
    %489 = vmatprep.subr.mxu0 0.0
    %490 = vmatpush1.xpose.msra.mxu0 0.0
    %491 = vmatprep.subr.mxu0 0.0
    %492 = vmatpush1.xpose.msra.mxu0 0.0
    %493 = vmatprep.subr.mxu0 0.0
    %494 = vmatpush1.xpose.msra.mxu0 0.0
    %495 = vmatprep.subr.mxu0 0.0
    %496 = vmatpush1.xpose.msra.mxu0 0.0
    %497 = vmatprep.mubr.f32.mxu0 0.0
    %498 = vmatmul.mubr.f32.gmra.mrb[0].mxu0 %v425
    %v499 = vpop.f32.mrb[0].mxu0
    %v500 = vadd.f32 %v157, %v499
    %v501 = vpop.f32.mrb[0].mxu0
    %502 = vmatprep.mubr.f32.mxu0 0.0
    %503 = vmatmul.mubr.f32.gmra.mrb[0].mxu0 %v427
    %v504 = vpop.f32.mrb[0].mxu0
    %v505 = vadd.f32 %v158, %v504
    %v506 = vpop.f32.mrb[0].mxu0
    %507 = vdwg.mxu0
    %vm508 = vcmask 130048
    %v509 = vsel %vm508, %v239, -inf
    %510 = vmax.xlane.f32.xlu0 %v509
    %v511 = vpop.xlane.xlu0 %510
    %v512 = vsel %vm508, %v244, -inf
    %513 = vmax.xlane.f32.xlu0 %v512
    %v514 = vpop.xlane.xlu0 %513
    %v515 = vsel %vm508, %v326, -inf
    %516 = vmax.xlane.f32.xlu0 %v515
    %v517 = vpop.xlane.xlu0 %516
    %v518 = vsel %vm508, %v331, -inf
    %519 = vmax.xlane.f32.xlu0 %v518
    %v520 = vpop.xlane.xlu0 %519
    %v521 = vsel %vm508, %v413, -inf
    %522 = vmax.xlane.f32.xlu0 %v521
    %v523 = vpop.xlane.xlu0 %522
    %v524 = vsel %vm508, %v418, -inf
    %525 = vmax.xlane.f32.xlu0 %v524
    %v526 = vpop.xlane.xlu0 %525
    %v527 = vsel %vm508, %v500, -inf
    %528 = vmax.xlane.f32.xlu0 %v527
    %v529 = vpop.xlane.xlu0 %528
    %v530 = vsel %vm508, %v505, -inf
    %531 = vmax.xlane.f32.xlu0 %v530
    %v532 = vpop.xlane.xlu0 %531
    %v533 = vsub.f32 %v239, %v511
    %v534 = vsub.f32 %v244, %v514
    %v535 = vsub.f32 %v326, %v517
    %v536 = vsub.f32 %v331, %v520
    %v537 = vsub.f32 %v413, %v523
    %v538 = vsub.f32 %v418, %v526
    %v539 = vsub.f32 %v500, %v529
    %v540 = vsub.f32 %v505, %v532
    %v541 = vmul.f32 %v533, 1.442695
    %v542 = vpow.pop %v541
    %v543 = vmul.f32 %v534, 1.442695
    %v544 = vpow.pop %v543
    %v545 = vmul.f32 %v535, 1.442695
    %v546 = vpow.pop %v545
    %v547 = vmul.f32 %v536, 1.442695
    %v548 = vpow.pop %v547
    %v549 = vmul.f32 %v537, 1.442695
    %v550 = vpow.pop %v549
    %v551 = vmul.f32 %v538, 1.442695
    %v552 = vpow.pop %v551
    %v553 = vmul.f32 %v539, 1.442695
    %v554 = vpow.pop %v553
    %v555 = vmul.f32 %v540, 1.442695
    %v556 = vpow.pop %v555
    %v557 = vsel %vm508, %v542, 0.0
    %558 = vadd.xlane.f32.xlu0 %v557
    %v559 = vpop.xlane.xlu0 %558
    %v560 = vsel %vm508, %v544, 0.0
    %561 = vadd.xlane.f32.xlu0 %v560
    %v562 = vpop.xlane.xlu0 %561
    %v563 = vsel %vm508, %v546, 0.0
    %564 = vadd.xlane.f32.xlu0 %v563
    %v565 = vpop.xlane.xlu0 %564
    %v566 = vsel %vm508, %v548, 0.0
    %567 = vadd.xlane.f32.xlu0 %v566
    %v568 = vpop.xlane.xlu0 %567
    %v569 = vsel %vm508, %v550, 0.0
    %570 = vadd.xlane.f32.xlu0 %v569
    %v571 = vpop.xlane.xlu0 %570
    %v572 = vsel %vm508, %v552, 0.0
    %573 = vadd.xlane.f32.xlu0 %v572
    %v574 = vpop.xlane.xlu0 %573
    %v575 = vsel %vm508, %v554, 0.0
    %576 = vadd.xlane.f32.xlu0 %v575
    %v577 = vpop.xlane.xlu0 %576
    %v578 = vsel %vm508, %v556, 0.0
    %579 = vadd.xlane.f32.xlu0 %v578
    %v580 = vpop.xlane.xlu0 %579
    %581 = vrot.lane.b32.xlu0 %v135, 112
    %v582 = vpop.permute.xlu0 %581
    %583 = vrot.lane.b32.xlu0 %v140, 112
    %v584 = vpop.permute.xlu0 %583
    %v588 = vsel %vm508, %v542, 0
    %v591 = vsel %vm508, %v544, 0
    %593 = vmatprep.subr.mxu0 0.0
    %594 = vmatpush1.msra.mxu0 %v582
    %595 = vmatprep.subr.mxu0 0.0
    %596 = vmatpush1.msra.mxu0 %v584
    %597 = vmatprep.subr.mxu0 0.0
    %598 = vmatpush1.msra.mxu0 0.0
    %599 = vmatprep.subr.mxu0 0.0
    %600 = vmatpush1.msra.mxu0 0.0
    %601 = vmatprep.subr.mxu0 0.0
    %602 = vmatpush1.msra.mxu0 0.0
    %603 = vmatprep.subr.mxu0 0.0
    %604 = vmatpush1.msra.mxu0 0.0
    %605 = vmatprep.subr.mxu0 0.0
    %606 = vmatpush1.msra.mxu0 0.0
    %607 = vmatprep.subr.mxu0 0.0
    %608 = vmatpush1.msra.mxu0 0.0
    %609 = vmatprep.subr.mxu0 0.0
    %610 = vmatpush1.msra.mxu0 0.0
    %611 = vmatprep.subr.mxu0 0.0
    %612 = vmatpush1.msra.mxu0 0.0
    %613 = vmatprep.subr.mxu0 0.0
    %614 = vmatpush1.msra.mxu0 0.0
    %615 = vmatprep.subr.mxu0 0.0
    %616 = vmatpush1.msra.mxu0 0.0
    %617 = vmatprep.subr.mxu0 0.0
    %618 = vmatpush1.msra.mxu0 0.0
    %619 = vmatprep.subr.mxu0 0.0
    %620 = vmatpush1.msra.mxu0 0.0
    %621 = vmatprep.subr.mxu0 0.0
    %622 = vmatpush1.msra.mxu0 0.0
    %623 = vmatprep.subr.mxu0 0.0
    %624 = vmatpush1.msra.mxu0 0.0
    %625 = vmatprep.subr.mxu0 0.0
    %626 = vmatpush1.msra.mxu0 0.0
    %627 = vmatprep.subr.mxu0 0.0
    %628 = vmatpush1.msra.mxu0 0.0
    %629 = vmatprep.subr.mxu0 0.0
    %630 = vmatpush1.msra.mxu0 0.0
    %631 = vmatprep.subr.mxu0 0.0
    %632 = vmatpush1.msra.mxu0 0.0
    %633 = vmatprep.subr.mxu0 0.0
    %634 = vmatpush1.msra.mxu0 0.0
    %635 = vmatprep.subr.mxu0 0.0
    %636 = vmatpush1.msra.mxu0 0.0
    %637 = vmatprep.subr.mxu0 0.0
    %638 = vmatpush1.msra.mxu0 0.0
    %639 = vmatprep.subr.mxu0 0.0
    %640 = vmatpush1.msra.mxu0 0.0
    %641 = vmatprep.subr.mxu0 0.0
    %642 = vmatpush1.msra.mxu0 0.0
    %643 = vmatprep.subr.mxu0 0.0
    %644 = vmatpush1.msra.mxu0 0.0
    %645 = vmatprep.subr.mxu0 0.0
    %646 = vmatpush1.msra.mxu0 0.0
    %647 = vmatprep.subr.mxu0 0.0
    %648 = vmatpush1.msra.mxu0 0.0
    %649 = vmatprep.subr.mxu0 0.0
    %650 = vmatpush1.msra.mxu0 0.0
    %651 = vmatprep.subr.mxu0 0.0
    %652 = vmatpush1.msra.mxu0 0.0
    %653 = vmatprep.subr.mxu0 0.0
    %654 = vmatpush1.msra.mxu0 0.0
    %655 = vmatprep.subr.mxu0 0.0
    %656 = vmatpush1.msra.mxu0 0.0
    %657 = vmatprep.mubr.f32.mxu0 0.0
    %658 = vmatmul.mubr.f32.gmra.mrb[0].mxu0 %v588
    %v659 = vpop.f32.mrb[0].mxu0
    %v660 = vadd.f32 0.0, %v659
    %v661 = vpop.f32.mrb[0].mxu0
    %662 = vmatprep.mubr.f32.mxu0 0.0
    %663 = vmatmul.mubr.f32.gmra.mrb[0].mxu0 %v591
    %v664 = vpop.f32.mrb[0].mxu0
    %v665 = vadd.f32 0.0, %v664
    %v666 = vpop.f32.mrb[0].mxu0
    %667 = vdwg.mxu0
    %668 = vrot.lane.b32.xlu0 %v146, 112
    %v669 = vpop.permute.xlu0 %668
    %670 = vrot.lane.b32.xlu0 %v148, 112
    %v671 = vpop.permute.xlu0 %670
    %v675 = vsel %vm508, %v546, 0
    %v678 = vsel %vm508, %v548, 0
    %680 = vmatprep.subr.mxu0 0.0
    %681 = vmatpush1.msra.mxu0 %v669
    %682 = vmatprep.subr.mxu0 0.0
    %683 = vmatpush1.msra.mxu0 %v671
    %684 = vmatprep.subr.mxu0 0.0
    %685 = vmatpush1.msra.mxu0 0.0
    %686 = vmatprep.subr.mxu0 0.0
    %687 = vmatpush1.msra.mxu0 0.0
    %688 = vmatprep.subr.mxu0 0.0
    %689 = vmatpush1.msra.mxu0 0.0
    %690 = vmatprep.subr.mxu0 0.0
    %691 = vmatpush1.msra.mxu0 0.0
    %692 = vmatprep.subr.mxu0 0.0
    %693 = vmatpush1.msra.mxu0 0.0
    %694 = vmatprep.subr.mxu0 0.0
    %695 = vmatpush1.msra.mxu0 0.0
    %696 = vmatprep.subr.mxu0 0.0
    %697 = vmatpush1.msra.mxu0 0.0
    %698 = vmatprep.subr.mxu0 0.0
    %699 = vmatpush1.msra.mxu0 0.0
    %700 = vmatprep.subr.mxu0 0.0
    %701 = vmatpush1.msra.mxu0 0.0
    %702 = vmatprep.subr.mxu0 0.0
    %703 = vmatpush1.msra.mxu0 0.0
    %704 = vmatprep.subr.mxu0 0.0
    %705 = vmatpush1.msra.mxu0 0.0
    %706 = vmatprep.subr.mxu0 0.0
    %707 = vmatpush1.msra.mxu0 0.0
    %708 = vmatprep.subr.mxu0 0.0
    %709 = vmatpush1.msra.mxu0 0.0
    %710 = vmatprep.subr.mxu0 0.0
    %711 = vmatpush1.msra.mxu0 0.0
    %712 = vmatprep.subr.mxu0 0.0
    %713 = vmatpush1.msra.mxu0 0.0
    %714 = vmatprep.subr.mxu0 0.0
    %715 = vmatpush1.msra.mxu0 0.0
    %716 = vmatprep.subr.mxu0 0.0
    %717 = vmatpush1.msra.mxu0 0.0
    %718 = vmatprep.subr.mxu0 0.0
    %719 = vmatpush1.msra.mxu0 0.0
    %720 = vmatprep.subr.mxu0 0.0
    %721 = vmatpush1.msra.mxu0 0.0
    %722 = vmatprep.subr.mxu0 0.0
    %723 = vmatpush1.msra.mxu0 0.0
    %724 = vmatprep.subr.mxu0 0.0
    %725 = vmatpush1.msra.mxu0 0.0
    %726 = vmatprep.subr.mxu0 0.0
    %727 = vmatpush1.msra.mxu0 0.0
    %728 = vmatprep.subr.mxu0 0.0
    %729 = vmatpush1.msra.mxu0 0.0
    %730 = vmatprep.subr.mxu0 0.0
    %731 = vmatpush1.msra.mxu0 0.0
    %732 = vmatprep.subr.mxu0 0.0
    %733 = vmatpush1.msra.mxu0 0.0
    %734 = vmatprep.subr.mxu0 0.0
    %735 = vmatpush1.msra.mxu0 0.0
    %736 = vmatprep.subr.mxu0 0.0
    %737 = vmatpush1.msra.mxu0 0.0
    %738 = vmatprep.subr.mxu0 0.0
    %739 = vmatpush1.msra.mxu0 0.0
    %740 = vmatprep.subr.mxu0 0.0
    %741 = vmatpush1.msra.mxu0 0.0
    %742 = vmatprep.subr.mxu0 0.0
    %743 = vmatpush1.msra.mxu0 0.0
    %744 = vmatprep.mubr.f32.mxu0 0.0
    %745 = vmatmul.mubr.f32.gmra.mrb[0].mxu0 %v675
    %v746 = vpop.f32.mrb[0].mxu0
    %v747 = vadd.f32 0.0, %v746
    %v748 = vpop.f32.mrb[0].mxu0
    %749 = vmatprep.mubr.f32.mxu0 0.0
    %750 = vmatmul.mubr.f32.gmra.mrb[0].mxu0 %v678
    %v751 = vpop.f32.mrb[0].mxu0
    %v752 = vadd.f32 0.0, %v751
    %v753 = vpop.f32.mrb[0].mxu0
    %754 = vdwg.mxu0
    %755 = vrot.lane.b32.xlu0 %v150, 112
    %v756 = vpop.permute.xlu0 %755
    %757 = vrot.lane.b32.xlu0 %v152, 112
    %v758 = vpop.permute.xlu0 %757
    %v762 = vsel %vm508, %v550, 0
    %v765 = vsel %vm508, %v552, 0
    %767 = vmatprep.subr.mxu0 0.0
    %768 = vmatpush1.msra.mxu0 %v756
    %769 = vmatprep.subr.mxu0 0.0
    %770 = vmatpush1.msra.mxu0 %v758
    %771 = vmatprep.subr.mxu0 0.0
    %772 = vmatpush1.msra.mxu0 0.0
    %773 = vmatprep.subr.mxu0 0.0
    %774 = vmatpush1.msra.mxu0 0.0
    %775 = vmatprep.subr.mxu0 0.0
    %776 = vmatpush1.msra.mxu0 0.0
    %777 = vmatprep.subr.mxu0 0.0
    %778 = vmatpush1.msra.mxu0 0.0
    %779 = vmatprep.subr.mxu0 0.0
    %780 = vmatpush1.msra.mxu0 0.0
    %781 = vmatprep.subr.mxu0 0.0
    %782 = vmatpush1.msra.mxu0 0.0
    %783 = vmatprep.subr.mxu0 0.0
    %784 = vmatpush1.msra.mxu0 0.0
    %785 = vmatprep.subr.mxu0 0.0
    %786 = vmatpush1.msra.mxu0 0.0
    %787 = vmatprep.subr.mxu0 0.0
    %788 = vmatpush1.msra.mxu0 0.0
    %789 = vmatprep.subr.mxu0 0.0
    %790 = vmatpush1.msra.mxu0 0.0
    %791 = vmatprep.subr.mxu0 0.0
    %792 = vmatpush1.msra.mxu0 0.0
    %793 = vmatprep.subr.mxu0 0.0
    %794 = vmatpush1.msra.mxu0 0.0
    %795 = vmatprep.subr.mxu0 0.0
    %796 = vmatpush1.msra.mxu0 0.0
    %797 = vmatprep.subr.mxu0 0.0
    %798 = vmatpush1.msra.mxu0 0.0
    %799 = vmatprep.subr.mxu0 0.0
    %800 = vmatpush1.msra.mxu0 0.0
    %801 = vmatprep.subr.mxu0 0.0
    %802 = vmatpush1.msra.mxu0 0.0
    %803 = vmatprep.subr.mxu0 0.0
    %804 = vmatpush1.msra.mxu0 0.0
    %805 = vmatprep.subr.mxu0 0.0
    %806 = vmatpush1.msra.mxu0 0.0
    %807 = vmatprep.subr.mxu0 0.0
    %808 = vmatpush1.msra.mxu0 0.0
    %809 = vmatprep.subr.mxu0 0.0
    %810 = vmatpush1.msra.mxu0 0.0
    %811 = vmatprep.subr.mxu0 0.0
    %812 = vmatpush1.msra.mxu0 0.0
    %813 = vmatprep.subr.mxu0 0.0
    %814 = vmatpush1.msra.mxu0 0.0
    %815 = vmatprep.subr.mxu0 0.0
    %816 = vmatpush1.msra.mxu0 0.0
    %817 = vmatprep.subr.mxu0 0.0
    %818 = vmatpush1.msra.mxu0 0.0
    %819 = vmatprep.subr.mxu0 0.0
    %820 = vmatpush1.msra.mxu0 0.0
    %821 = vmatprep.subr.mxu0 0.0
    %822 = vmatpush1.msra.mxu0 0.0
    %823 = vmatprep.subr.mxu0 0.0
    %824 = vmatpush1.msra.mxu0 0.0
    %825 = vmatprep.subr.mxu0 0.0
    %826 = vmatpush1.msra.mxu0 0.0
    %827 = vmatprep.subr.mxu0 0.0
    %828 = vmatpush1.msra.mxu0 0.0
    %829 = vmatprep.subr.mxu0 0.0
    %830 = vmatpush1.msra.mxu0 0.0
    %831 = vmatprep.mubr.f32.mxu0 0.0
    %832 = vmatmul.mubr.f32.gmra.mrb[0].mxu0 %v762
    %v833 = vpop.f32.mrb[0].mxu0
    %v834 = vadd.f32 0.0, %v833
    %v835 = vpop.f32.mrb[0].mxu0
    %836 = vmatprep.mubr.f32.mxu0 0.0
    %837 = vmatmul.mubr.f32.gmra.mrb[0].mxu0 %v765
    %v838 = vpop.f32.mrb[0].mxu0
    %v839 = vadd.f32 0.0, %v838
    %v840 = vpop.f32.mrb[0].mxu0
    %841 = vdwg.mxu0
    %842 = vrot.lane.b32.xlu0 %v154, 112
    %v843 = vpop.permute.xlu0 %842
    %844 = vrot.lane.b32.xlu0 %v156, 112
    %v845 = vpop.permute.xlu0 %844
    %v849 = vsel %vm508, %v554, 0
    %v852 = vsel %vm508, %v556, 0
    %854 = vmatprep.subr.mxu0 0.0
    %855 = vmatpush1.msra.mxu0 %v843
    %856 = vmatprep.subr.mxu0 0.0
    %857 = vmatpush1.msra.mxu0 %v845
    %858 = vmatprep.subr.mxu0 0.0
    %859 = vmatpush1.msra.mxu0 0.0
    %860 = vmatprep.subr.mxu0 0.0
    %861 = vmatpush1.msra.mxu0 0.0
    %862 = vmatprep.subr.mxu0 0.0
    %863 = vmatpush1.msra.mxu0 0.0
    %864 = vmatprep.subr.mxu0 0.0
    %865 = vmatpush1.msra.mxu0 0.0
    %866 = vmatprep.subr.mxu0 0.0
    %867 = vmatpush1.msra.mxu0 0.0
    %868 = vmatprep.subr.mxu0 0.0
    %869 = vmatpush1.msra.mxu0 0.0
    %870 = vmatprep.subr.mxu0 0.0
    %871 = vmatpush1.msra.mxu0 0.0
    %872 = vmatprep.subr.mxu0 0.0
    %873 = vmatpush1.msra.mxu0 0.0
    %874 = vmatprep.subr.mxu0 0.0
    %875 = vmatpush1.msra.mxu0 0.0
    %876 = vmatprep.subr.mxu0 0.0
    %877 = vmatpush1.msra.mxu0 0.0
    %878 = vmatprep.subr.mxu0 0.0
    %879 = vmatpush1.msra.mxu0 0.0
    %880 = vmatprep.subr.mxu0 0.0
    %881 = vmatpush1.msra.mxu0 0.0
    %882 = vmatprep.subr.mxu0 0.0
    %883 = vmatpush1.msra.mxu0 0.0
    %884 = vmatprep.subr.mxu0 0.0
    %885 = vmatpush1.msra.mxu0 0.0
    %886 = vmatprep.subr.mxu0 0.0
    %887 = vmatpush1.msra.mxu0 0.0
    %888 = vmatprep.subr.mxu0 0.0
    %889 = vmatpush1.msra.mxu0 0.0
    %890 = vmatprep.subr.mxu0 0.0
    %891 = vmatpush1.msra.mxu0 0.0
    %892 = vmatprep.subr.mxu0 0.0
    %893 = vmatpush1.msra.mxu0 0.0
    %894 = vmatprep.subr.mxu0 0.0
    %895 = vmatpush1.msra.mxu0 0.0
    %896 = vmatprep.subr.mxu0 0.0
    %897 = vmatpush1.msra.mxu0 0.0
    %898 = vmatprep.subr.mxu0 0.0
    %899 = vmatpush1.msra.mxu0 0.0
    %900 = vmatprep.subr.mxu0 0.0
    %901 = vmatpush1.msra.mxu0 0.0
    %902 = vmatprep.subr.mxu0 0.0
    %903 = vmatpush1.msra.mxu0 0.0
    %904 = vmatprep.subr.mxu0 0.0
    %905 = vmatpush1.msra.mxu0 0.0
    %906 = vmatprep.subr.mxu0 0.0
    %907 = vmatpush1.msra.mxu0 0.0
    %908 = vmatprep.subr.mxu0 0.0
    %909 = vmatpush1.msra.mxu0 0.0
    %910 = vmatprep.subr.mxu0 0.0
    %911 = vmatpush1.msra.mxu0 0.0
    %912 = vmatprep.subr.mxu0 0.0
    %913 = vmatpush1.msra.mxu0 0.0
    %914 = vmatprep.subr.mxu0 0.0
    %915 = vmatpush1.msra.mxu0 0.0
    %916 = vmatprep.subr.mxu0 0.0
    %917 = vmatpush1.msra.mxu0 0.0
    %918 = vmatprep.mubr.f32.mxu0 0.0
    %919 = vmatmul.mubr.f32.gmra.mrb[0].mxu0 %v849
    %v920 = vpop.f32.mrb[0].mxu0
    %v921 = vadd.f32 0.0, %v920
    %v922 = vpop.f32.mrb[0].mxu0
    %923 = vmatprep.mubr.f32.mxu0 0.0
    %924 = vmatmul.mubr.f32.gmra.mrb[0].mxu0 %v852
    %v925 = vpop.f32.mrb[0].mxu0
    %v926 = vadd.f32 0.0, %v925
    %v927 = vpop.f32.mrb[0].mxu0
    %928 = vdwg.mxu0
    %v929 = vrcp.pop %v559
    %v930 = vrcp.pop %v562
    %v931 = vrcp.pop %v565
    %v932 = vrcp.pop %v568
    %v933 = vrcp.pop %v571
    %v934 = vrcp.pop %v574
    %v935 = vrcp.pop %v577
    %v936 = vrcp.pop %v580
    %v937 = vmul.f32 %v660, %v929
    %v938 = vmul.f32 %v665, %v930
    %v939 = vmul.f32 %v747, %v931
    %v940 = vmul.f32 %v752, %v932
    %v941 = vmul.f32 %v834, %v933
    %v942 = vmul.f32 %v839, %v934
    %v943 = vmul.f32 %v921, %v935
    %v944 = vmul.f32 %v926, %v936
    %947 = vrot.lane.b32.xlu0 %v939, 8
    %v948 = vpop.permute.xlu0 %947
    %949 = vrot.lane.b32.xlu0 %v940, 8
    %v950 = vpop.permute.xlu0 %949
    %955 = vrot.lane.b32.xlu0 %v941, 16
    %v956 = vpop.permute.xlu0 %955
    %957 = vrot.lane.b32.xlu0 %v942, 16
    %v958 = vpop.permute.xlu0 %957
    %963 = vrot.lane.b32.xlu0 %v943, 24
    %v964 = vpop.permute.xlu0 %963
    %965 = vrot.lane.b32.xlu0 %v944, 24
    %v966 = vpop.permute.xlu0 %965
    %v969 = vsel %vm163, %v937, %v948
    %v970 = vsel %vm163, %v938, %v950
    %v971 = vsel %vm508, %v969, %v956
    %v972 = vsel %vm508, %v970, %v958
    %vm973 = vcmask 195584
    %v974 = vsel %vm973, %v971, %v964
    %v975 = vsel %vm973, %v972, %v966
    %v976 = vld [vmem:[%s4] sm:$0xff]
    %v977 = vld [vmem:[%s4 + $0x8] sm:$0xff]
    %v978 = vld [vmem:[%s4 + $0x10] sm:$0xff]
    %v979 = vld [vmem:[%s4 + $0x18] sm:$0xff]
    %v980 = vld [vmem:[%s5] sm:$0x1]
    %v982 = vlaneseq
    %v983 = vshrl.u32 %v982, 7
    %v984 = vsub.s32 0, %v983
    %v985 = vrot.slane %v980, %v984
    %v988 = vsel %vm61, %v974, 0
    %v991 = vsel %vm61, %v975, 0
    %993 = vmatprep.subr.mxu0 0.0
    %994 = vmatpush1.msra.mxu0 %v976
    %995 = vmatprep.subr.mxu0 0.0
    %996 = vmatpush1.msra.mxu0 %v977
    %997 = vmatprep.subr.mxu0 0.0
    %998 = vmatpush1.msra.mxu0 %v978
    %999 = vmatprep.subr.mxu0 0.0
    %1000 = vmatpush1.msra.mxu0 %v979
    %1001 = vmatprep.subr.mxu0 0.0
    %1002 = vmatpush1.msra.mxu0 0.0
    %1003 = vmatprep.subr.mxu0 0.0
    %1004 = vmatpush1.msra.mxu0 0.0
    %1005 = vmatprep.subr.mxu0 0.0
    %1006 = vmatpush1.msra.mxu0 0.0
    %1007 = vmatprep.subr.mxu0 0.0
    %1008 = vmatpush1.msra.mxu0 0.0
    %1009 = vmatprep.subr.mxu0 0.0
    %1010 = vmatpush1.msra.mxu0 0.0
    %1011 = vmatprep.subr.mxu0 0.0
    %1012 = vmatpush1.msra.mxu0 0.0
    %1013 = vmatprep.subr.mxu0 0.0
    %1014 = vmatpush1.msra.mxu0 0.0
    %1015 = vmatprep.subr.mxu0 0.0
    %1016 = vmatpush1.msra.mxu0 0.0
    %1017 = vmatprep.subr.mxu0 0.0
    %1018 = vmatpush1.msra.mxu0 0.0
    %1019 = vmatprep.subr.mxu0 0.0
    %1020 = vmatpush1.msra.mxu0 0.0
    %1021 = vmatprep.subr.mxu0 0.0
    %1022 = vmatpush1.msra.mxu0 0.0
    %1023 = vmatprep.subr.mxu0 0.0
    %1024 = vmatpush1.msra.mxu0 0.0
    %1025 = vmatprep.subr.mxu0 0.0
    %1026 = vmatpush1.msra.mxu0 0.0
    %1027 = vmatprep.subr.mxu0 0.0
    %1028 = vmatpush1.msra.mxu0 0.0
    %1029 = vmatprep.subr.mxu0 0.0
    %1030 = vmatpush1.msra.mxu0 0.0
    %1031 = vmatprep.subr.mxu0 0.0
    %1032 = vmatpush1.msra.mxu0 0.0
    %1033 = vmatprep.subr.mxu0 0.0
    %1034 = vmatpush1.msra.mxu0 0.0
    %1035 = vmatprep.subr.mxu0 0.0
    %1036 = vmatpush1.msra.mxu0 0.0
    %1037 = vmatprep.subr.mxu0 0.0
    %1038 = vmatpush1.msra.mxu0 0.0
    %1039 = vmatprep.subr.mxu0 0.0
    %1040 = vmatpush1.msra.mxu0 0.0
    %1041 = vmatprep.subr.mxu0 0.0
    %1042 = vmatpush1.msra.mxu0 0.0
    %1043 = vmatprep.subr.mxu0 0.0
    %1044 = vmatpush1.msra.mxu0 0.0
    %1045 = vmatprep.subr.mxu0 0.0
    %1046 = vmatpush1.msra.mxu0 0.0
    %1047 = vmatprep.subr.mxu0 0.0
    %1048 = vmatpush1.msra.mxu0 0.0
    %1049 = vmatprep.subr.mxu0 0.0
    %1050 = vmatpush1.msra.mxu0 0.0
    %1051 = vmatprep.subr.mxu0 0.0
    %1052 = vmatpush1.msra.mxu0 0.0
    %1053 = vmatprep.subr.mxu0 0.0
    %1054 = vmatpush1.msra.mxu0 0.0
    %1055 = vmatprep.subr.mxu0 0.0
    %1056 = vmatpush1.msra.mxu0 0.0
    %1057 = vmatprep.mubr.f32.mxu0 0.0
    %1058 = vmatmul.mubr.f32.gmra.mrb[0].mxu0 %v988
    %v1059 = vpop.f32.mrb[0].mxu0
    %v1060 = vadd.f32 %v985, %v1059
    %v1061 = vpop.f32.mrb[0].mxu0
    %1062 = vmatprep.mubr.f32.mxu0 0.0
    %1063 = vmatmul.mubr.f32.gmra.mrb[0].mxu0 %v991
    %v1064 = vpop.f32.mrb[0].mxu0
    %v1065 = vadd.f32 %v985, %v1064
    %v1066 = vpop.f32.mrb[0].mxu0
    %1067 = vdwg.mxu0
    %v1068 = vadd.f32 %v48, %v1060
    %v1069 = vadd.f32 %v49, %v1065
    %v1070 = vsel %vm61, %v1068, 0.0
    %1071 = vadd.xlane.f32.xlu0 %v1070
    %v1072 = vpop.xlane.xlu0 %1071
    %v1073 = vsel %vm61, %v1069, 0.0
    %1074 = vadd.xlane.f32.xlu0 %v1073
    %v1075 = vpop.xlane.xlu0 %1074
    %v1076 = vrcp.pop 32.0
    %v1077 = vmul.f32 %v1072, %v1076
    %v1078 = vmul.f32 %v1075, %v1076
    %v1079 = vsub.f32 %v1068, %v1077
    %v1080 = vsub.f32 %v1069, %v1078
    %v1081 = vmul.f32 %v1079, %v1079
    %v1082 = vmul.f32 %v1080, %v1080
    %v1083 = vsel %vm61, %v1081, 0.0
    %1084 = vadd.xlane.f32.xlu0 %v1083
    %v1085 = vpop.xlane.xlu0 %1084
    %v1086 = vsel %vm61, %v1082, 0.0
    %1087 = vadd.xlane.f32.xlu0 %v1086
    %v1088 = vpop.xlane.xlu0 %1087
    %v1089 = vmul.f32 %v1085, %v1076
    %v1090 = vmul.f32 %v1088, %v1076
    %v1091 = vadd.f32 %v1089, 1e-05
    %v1092 = vadd.f32 %v1090, 1e-05
    %v1093 = vrsqrt.pop %v1091
    %v1094 = vrsqrt.pop %v1092
    %v1095 = vmul.f32 %v1079, %v1093
    %v1096 = vmul.f32 %v1080, %v1094
    %v1097 = vld [vmem:[%s6] sm:$0x1]
    %v1099 = vlaneseq
    %v1100 = vshrl.u32 %v1099, 7
    %v1101 = vsub.s32 0, %v1100
    %v1102 = vrot.slane %v1097, %v1101
    %v1104 = vmul.f32 %v1095, %v1102
    %v1105 = vmul.f32 %v1096, %v1102
    %v1106 = vld [vmem:[%s7] sm:$0x1]
    %v1108 = vlaneseq
    %v1109 = vshrl.u32 %v1108, 7
    %v1110 = vsub.s32 0, %v1109
    %v1111 = vrot.slane %v1106, %v1110
    %v1113 = vadd.f32 %v1104, %v1111
    %v1114 = vadd.f32 %v1105, %v1111
    %v1115 = vld [vmem:[%s8] sm:$0xff]
    %v1116 = vld [vmem:[%s8 + $0x8] sm:$0xff]
    %v1117 = vld [vmem:[%s8 + $0x10] sm:$0xff]
    %v1118 = vld [vmem:[%s8 + $0x18] sm:$0xff]
    %v1119 = vld [vmem:[%s9] sm:$0x1]
    %v1121 = vlaneseq
    %v1122 = vshrl.u32 %v1121, 7
    %v1123 = vsub.s32 0, %v1122
    %v1124 = vrot.slane %v1119, %v1123
    %v1127 = vsel %vm61, %v1113, 0
    %v1130 = vsel %vm61, %v1114, 0
    %1132 = vmatprep.subr.mxu0 0.0
    %1133 = vmatpush1.msra.mxu0 %v1115
    %1134 = vmatprep.subr.mxu0 0.0
    %1135 = vmatpush1.msra.mxu0 %v1116
    %1136 = vmatprep.subr.mxu0 0.0
    %1137 = vmatpush1.msra.mxu0 %v1117
    %1138 = vmatprep.subr.mxu0 0.0
    %1139 = vmatpush1.msra.mxu0 %v1118
    %1140 = vmatprep.subr.mxu0 0.0
    %1141 = vmatpush1.msra.mxu0 0.0
    %1142 = vmatprep.subr.mxu0 0.0
    %1143 = vmatpush1.msra.mxu0 0.0
    %1144 = vmatprep.subr.mxu0 0.0
    %1145 = vmatpush1.msra.mxu0 0.0
    %1146 = vmatprep.subr.mxu0 0.0
    %1147 = vmatpush1.msra.mxu0 0.0
    %1148 = vmatprep.subr.mxu0 0.0
    %1149 = vmatpush1.msra.mxu0 0.0
    %1150 = vmatprep.subr.mxu0 0.0
    %1151 = vmatpush1.msra.mxu0 0.0
    %1152 = vmatprep.subr.mxu0 0.0
    %1153 = vmatpush1.msra.mxu0 0.0
    %1154 = vmatprep.subr.mxu0 0.0
    %1155 = vmatpush1.msra.mxu0 0.0
    %1156 = vmatprep.subr.mxu0 0.0
    %1157 = vmatpush1.msra.mxu0 0.0
    %1158 = vmatprep.subr.mxu0 0.0
    %1159 = vmatpush1.msra.mxu0 0.0
    %1160 = vmatprep.subr.mxu0 0.0
    %1161 = vmatpush1.msra.mxu0 0.0
    %1162 = vmatprep.subr.mxu0 0.0
    %1163 = vmatpush1.msra.mxu0 0.0
    %1164 = vmatprep.subr.mxu0 0.0
    %1165 = vmatpush1.msra.mxu0 0.0
    %1166 = vmatprep.subr.mxu0 0.0
    %1167 = vmatpush1.msra.mxu0 0.0
    %1168 = vmatprep.subr.mxu0 0.0
    %1169 = vmatpush1.msra.mxu0 0.0
    %1170 = vmatprep.subr.mxu0 0.0
    %1171 = vmatpush1.msra.mxu0 0.0
    %1172 = vmatprep.subr.mxu0 0.0
    %1173 = vmatpush1.msra.mxu0 0.0
    %1174 = vmatprep.subr.mxu0 0.0
    %1175 = vmatpush1.msra.mxu0 0.0
    %1176 = vmatprep.subr.mxu0 0.0
    %1177 = vmatpush1.msra.mxu0 0.0
    %1178 = vmatprep.subr.mxu0 0.0
    %1179 = vmatpush1.msra.mxu0 0.0
    %1180 = vmatprep.subr.mxu0 0.0
    %1181 = vmatpush1.msra.mxu0 0.0
    %1182 = vmatprep.subr.mxu0 0.0
    %1183 = vmatpush1.msra.mxu0 0.0
    %1184 = vmatprep.subr.mxu0 0.0
    %1185 = vmatpush1.msra.mxu0 0.0
    %1186 = vmatprep.subr.mxu0 0.0
    %1187 = vmatpush1.msra.mxu0 0.0
    %1188 = vmatprep.subr.mxu0 0.0
    %1189 = vmatpush1.msra.mxu0 0.0
    %1190 = vmatprep.subr.mxu0 0.0
    %1191 = vmatpush1.msra.mxu0 0.0
    %1192 = vmatprep.subr.mxu0 0.0
    %1193 = vmatpush1.msra.mxu0 0.0
    %1194 = vmatprep.subr.mxu0 0.0
    %1195 = vmatpush1.msra.mxu0 0.0
    %1196 = vmatprep.mubr.f32.mxu0 0.0
    %1197 = vmatmul.mubr.f32.gmra.mrb[0].mxu0 %v1127
    %v1198 = vpop.f32.mrb[0].mxu0
    %v1199 = vadd.f32 %v1124, %v1198
    %v1200 = vpop.f32.mrb[0].mxu0
    %1201 = vmatprep.mubr.f32.mxu0 0.0
    %1202 = vmatmul.mubr.f32.gmra.mrb[0].mxu0 %v1130
    %v1203 = vpop.f32.mrb[0].mxu0
    %v1204 = vadd.f32 %v1124, %v1203
    %v1205 = vpop.f32.mrb[0].mxu0
    %1206 = vdwg.mxu0
    %v1207 = vmax.f32 %v1199, 0.0
    %v1208 = vmax.f32 %v1204, 0.0
    %v1209 = vld [vmem:[%s10] sm:$0xff]
    %v1210 = vld [vmem:[%s10 + $0x8] sm:$0xff]
    %v1211 = vld [vmem:[%s10 + $0x10] sm:$0xff]
    %v1212 = vld [vmem:[%s10 + $0x18] sm:$0xff]
    %v1213 = vld [vmem:[%s10 + $0x20] sm:$0xff]
    %v1214 = vld [vmem:[%s10 + $0x28] sm:$0xff]
    %v1215 = vld [vmem:[%s10 + $0x30] sm:$0xff]
    %v1216 = vld [vmem:[%s10 + $0x38] sm:$0xff]
    %v1217 = vld [vmem:[%s10 + $0x40] sm:$0xff]
    %v1218 = vld [vmem:[%s10 + $0x48] sm:$0xff]
    %v1219 = vld [vmem:[%s10 + $0x50] sm:$0xff]
    %v1220 = vld [vmem:[%s10 + $0x58] sm:$0xff]
    %v1221 = vld [vmem:[%s10 + $0x60] sm:$0xff]
    %v1222 = vld [vmem:[%s10 + $0x68] sm:$0xff]
    %v1223 = vld [vmem:[%s10 + $0x70] sm:$0xff]
    %v1224 = vld [vmem:[%s10 + $0x78] sm:$0xff]
    %v1225 = vld [vmem:[%s11] sm:$0x1]
    %v1227 = vlaneseq
    %v1228 = vshrl.u32 %v1227, 7
    %v1229 = vsub.s32 0, %v1228
    %v1230 = vrot.slane %v1225, %v1229
    %1232 = vmatprep.subr.mxu0 0.0
    %1233 = vmatpush1.msra.mxu0 %v1209
    %1234 = vmatprep.subr.mxu0 0.0
    %1235 = vmatpush1.msra.mxu0 %v1210
    %1236 = vmatprep.subr.mxu0 0.0
    %1237 = vmatpush1.msra.mxu0 %v1211
    %1238 = vmatprep.subr.mxu0 0.0
    %1239 = vmatpush1.msra.mxu0 %v1212
    %1240 = vmatprep.subr.mxu0 0.0
    %1241 = vmatpush1.msra.mxu0 %v1213
    %1242 = vmatprep.subr.mxu0 0.0
    %1243 = vmatpush1.msra.mxu0 %v1214
    %1244 = vmatprep.subr.mxu0 0.0
    %1245 = vmatpush1.msra.mxu0 %v1215
    %1246 = vmatprep.subr.mxu0 0.0
    %1247 = vmatpush1.msra.mxu0 %v1216
    %1248 = vmatprep.subr.mxu0 0.0
    %1249 = vmatpush1.msra.mxu0 %v1217
    %1250 = vmatprep.subr.mxu0 0.0
    %1251 = vmatpush1.msra.mxu0 %v1218
    %1252 = vmatprep.subr.mxu0 0.0
    %1253 = vmatpush1.msra.mxu0 %v1219
    %1254 = vmatprep.subr.mxu0 0.0
    %1255 = vmatpush1.msra.mxu0 %v1220
    %1256 = vmatprep.subr.mxu0 0.0
    %1257 = vmatpush1.msra.mxu0 %v1221
    %1258 = vmatprep.subr.mxu0 0.0
    %1259 = vmatpush1.msra.mxu0 %v1222
    %1260 = vmatprep.subr.mxu0 0.0
    %1261 = vmatpush1.msra.mxu0 %v1223
    %1262 = vmatprep.subr.mxu0 0.0
    %1263 = vmatpush1.msra.mxu0 %v1224
    %1264 = vmatprep.subr.mxu0 0.0
    %1265 = vmatpush1.msra.mxu0 0.0
    %1266 = vmatprep.subr.mxu0 0.0
    %1267 = vmatpush1.msra.mxu0 0.0
    %1268 = vmatprep.subr.mxu0 0.0
    %1269 = vmatpush1.msra.mxu0 0.0
    %1270 = vmatprep.subr.mxu0 0.0
    %1271 = vmatpush1.msra.mxu0 0.0
    %1272 = vmatprep.subr.mxu0 0.0
    %1273 = vmatpush1.msra.mxu0 0.0
    %1274 = vmatprep.subr.mxu0 0.0
    %1275 = vmatpush1.msra.mxu0 0.0
    %1276 = vmatprep.subr.mxu0 0.0
    %1277 = vmatpush1.msra.mxu0 0.0
    %1278 = vmatprep.subr.mxu0 0.0
    %1279 = vmatpush1.msra.mxu0 0.0
    %1280 = vmatprep.subr.mxu0 0.0
    %1281 = vmatpush1.msra.mxu0 0.0
    %1282 = vmatprep.subr.mxu0 0.0
    %1283 = vmatpush1.msra.mxu0 0.0
    %1284 = vmatprep.subr.mxu0 0.0
    %1285 = vmatpush1.msra.mxu0 0.0
    %1286 = vmatprep.subr.mxu0 0.0
    %1287 = vmatpush1.msra.mxu0 0.0
    %1288 = vmatprep.subr.mxu0 0.0
    %1289 = vmatpush1.msra.mxu0 0.0
    %1290 = vmatprep.subr.mxu0 0.0
    %1291 = vmatpush1.msra.mxu0 0.0
    %1292 = vmatprep.subr.mxu0 0.0
    %1293 = vmatpush1.msra.mxu0 0.0
    %1294 = vmatprep.subr.mxu0 0.0
    %1295 = vmatpush1.msra.mxu0 0.0
    %1296 = vmatprep.mubr.f32.mxu0 0.0
    %1297 = vmatmul.mubr.f32.gmra.mrb[0].mxu0 %v1207
    %v1298 = vpop.f32.mrb[0].mxu0
    %v1299 = vadd.f32 %v1230, %v1298
    %v1300 = vpop.f32.mrb[0].mxu0
    %1301 = vmatprep.mubr.f32.mxu0 0.0
    %1302 = vmatmul.mubr.f32.gmra.mrb[0].mxu0 %v1208
    %v1303 = vpop.f32.mrb[0].mxu0
    %v1304 = vadd.f32 %v1230, %v1303
    %v1305 = vpop.f32.mrb[0].mxu0
    %1306 = vdwg.mxu0
    %v1307 = vadd.f32 %v1113, %v1299
    %v1308 = vadd.f32 %v1114, %v1304
    %v1309 = vsel %vm61, %v1307, 0.0
    %1310 = vadd.xlane.f32.xlu0 %v1309
    %v1311 = vpop.xlane.xlu0 %1310
    %v1312 = vsel %vm61, %v1308, 0.0
    %1313 = vadd.xlane.f32.xlu0 %v1312
    %v1314 = vpop.xlane.xlu0 %1313
    %v1315 = vmul.f32 %v1311, %v1076
    %v1316 = vmul.f32 %v1314, %v1076
    %v1317 = vsub.f32 %v1307, %v1315
    %v1318 = vsub.f32 %v1308, %v1316
    %v1319 = vmul.f32 %v1317, %v1317
    %v1320 = vmul.f32 %v1318, %v1318
    %v1321 = vsel %vm61, %v1319, 0.0
    %1322 = vadd.xlane.f32.xlu0 %v1321
    %v1323 = vpop.xlane.xlu0 %1322
    %v1324 = vsel %vm61, %v1320, 0.0
    %1325 = vadd.xlane.f32.xlu0 %v1324
    %v1326 = vpop.xlane.xlu0 %1325
    %v1327 = vmul.f32 %v1323, %v1076
    %v1328 = vmul.f32 %v1326, %v1076
    %v1329 = vadd.f32 %v1327, 1e-05
    %v1330 = vadd.f32 %v1328, 1e-05
    %v1331 = vrsqrt.pop %v1329
    %v1332 = vrsqrt.pop %v1330
    %v1333 = vmul.f32 %v1317, %v1331
    %v1334 = vmul.f32 %v1318, %v1332
    %v1335 = vld [vmem:[%s12] sm:$0x1]
    %v1337 = vlaneseq
    %v1338 = vshrl.u32 %v1337, 7
    %v1339 = vsub.s32 0, %v1338
    %v1340 = vrot.slane %v1335, %v1339
    %v1342 = vmul.f32 %v1333, %v1340
    %v1343 = vmul.f32 %v1334, %v1340
    %v1344 = vld [vmem:[%s13] sm:$0x1]
    %v1346 = vlaneseq
    %v1347 = vshrl.u32 %v1346, 7
    %v1348 = vsub.s32 0, %v1347
    %v1349 = vrot.slane %v1344, %v1348
    %v1351 = vadd.f32 %v1342, %v1349
    %v1352 = vadd.f32 %v1343, %v1349
    %1353 = vst.msk [vmem:[#allocation2] sm:$0xff] %vm61, %v1351
    %1354 = vst.msk [vmem:[#allocation2 + $0x8] sm:$0xff] %vm61, %v1352
    // Predicated region
    $region58: #{cross_modal_transformer.1} parent=1 // pred_check
      _
    $region59: #{cross_modal_transformer.1} parent=1 // pred_check_branch
      %1356 = sbr.rel (0) target = $region61
    $region60: #{cross_modal_transformer.1} parent=1 // pred_region
      %s1358 = ssub.s32 256, 256
      %1359 = vsyncadd [#allocation3], %s1358
      %s1360 = sshll.u32 [#allocation2], 4
      %s1361 = int_to_ptr.vmem [resolvable:$true] %s1360
      %1366 = dma.vmem_to_hbm [thread:$0]  %s1361, 256, %s14, [#allocation3], 128, 128, 8
    $region61: #{cross_modal_transformer.1} parent=1 // pred_fallthru
      _
    // Predicated region
    $region62: #{cross_modal_transformer.1} parent=1 // pred_check
      _
    $region63: #{cross_modal_transformer.1} parent=1 // pred_check_branch
      %1368 = sbr.rel (0) target = $region65
    $region64: #{cross_modal_transformer.1} parent=1 // pred_region
      %1369 = dma.done [#allocation3], 256
    $region65: #{cross_modal_transformer.1} parent=1 // pred_fallthru
      _
    %1370 = vsyncpa [#allocation3], 1

</llo_original>
